<compile_context>
chip_gen: v7x
topology: tpu7x:2x2x1
jax: 0.10.0
libtpu: 0.0.40
codegen_flags: <defaults>
</compile_context>

<pallas_src>
import functools
from collections import namedtuple

import jax
import jax.numpy as jnp
from jax import lax
from jax.experimental import pallas as pl
from jax.experimental.pallas import tpu as pltpu

HIDDEN = 32
VOCAB = 16
SEQ = 8
NUM_CLASSES = 2
PROJ = 32                     # must equal HIDDEN for the packed-slab layout below
TEMPERATURE = 0.5             # SimCLRContrastiveLoss default
LAMBDA_W = 0.5
LAMBDA_MMD = 1.0
MMD_BANDWIDTHS = (10.0, 15.0, 20.0, 50.0)

# ---- packed parameter slab layout (rows x HIDDEN cols, 8-row aligned sections) ----
_EMB_OFF = 0
_WENC_OFF = _EMB_OFF + VOCAB          # 16
_BENC_OFF = _WENC_OFF + HIDDEN        # 48
_WCLS_OFF = _BENC_OFF + 8             # 56
_BCLS_OFF = _WCLS_OFF + HIDDEN        # 88
_WMLP1_OFF = _BCLS_OFF + 8            # 96
_BMLP1_OFF = _WMLP1_OFF + HIDDEN      # 128
_WMLP2_OFF = _BMLP1_OFF + 8           # 136
_BMLP2_OFF = _WMLP2_OFF + HIDDEN      # 168
_PARAM_ROWS = _BMLP2_OFF + 8          # 176


# ------------------------------ fused kernel -------------------------------

def _fused_kernel(data_ref, p_ref, losses_ref, logits_ref,
                  *, batch, seq, lab_off, temperature, lambda_w, lambda_mmd):
    f32 = jnp.float32
    B, S = batch, seq
    P = 4 * B                 # pooled rows: [src, src_perturb, tgt, tgt_perturb]
    R = P * S                 # stacked token rows
    two_b = 2 * B
    H = HIDDEN
    dot_rr = (((1,), (1,)), ((), ()))          # a @ b.T (contract last dims)

    # ---- static views into the packed parameter slab (8-row aligned slices) ----
    emb_w = p_ref[_EMB_OFF:_EMB_OFF + VOCAB, :]
    w_enc = p_ref[_WENC_OFF:_WENC_OFF + HIDDEN, :]
    b_enc = p_ref[_BENC_OFF:_BENC_OFF + 1, :]
    w_cls = p_ref[_WCLS_OFF:_WCLS_OFF + HIDDEN, :]     # cols >= NUM_CLASSES are 0
    b_cls = p_ref[_BCLS_OFF:_BCLS_OFF + 1, :]          # cols >= NUM_CLASSES are -1e9
    w_mlp1 = p_ref[_WMLP1_OFF:_WMLP1_OFF + HIDDEN, :]
    b_mlp1 = p_ref[_BMLP1_OFF:_BMLP1_OFF + 1, :]
    w_mlp2 = p_ref[_WMLP2_OFF:_WMLP2_OFF + HIDDEN, :]
    b_mlp2 = p_ref[_BMLP2_OFF:_BMLP2_OFF + 1, :]

    # ---- merged int slab: ids / labels in col 0, bitcast f32 mask in col 1 ----
    ids = data_ref[0:R, 0:1]                                        # [R,1] int32
    mask = pltpu.bitcast(data_ref[0:R, 1:2], f32)                   # [R,1] f32
    lab = data_ref[lab_off:lab_off + P, 0:1]                        # [P,1] int32

    # ---- embedding gather fused as a one-hot matmul (stays on the MXU) ----
    tok_iota = lax.broadcasted_iota(jnp.int32, (R, VOCAB), 1)
    onehot_tok = (tok_iota == ids).astype(f32)                      # [R, VOCAB]
    emb = jnp.dot(onehot_tok, emb_w, preferred_element_type=f32)    # [R, H]

    # ---- encoder: linear + tanh + attention mask ----
    h = jnp.tanh(jnp.dot(emb, w_enc, preferred_element_type=f32) + b_enc)
    h = h * mask                                                    # [R, H]

    # ---- pooling: ONE fused [2P,R] selector matmul (CLS pick + sequence mean) ----
    prow = lax.broadcasted_iota(jnp.int32, (2 * P, R), 0)
    pcol = lax.broadcasted_iota(jnp.int32, (2 * P, R), 1)
    seq_i = jnp.where(prow < P, prow, prow - P)
    start = seq_i * S
    in_seq = jnp.logical_and(pcol >= start, pcol < start + S)
    sel = jnp.where(prow < P,
                    (pcol == start).astype(f32),                    # CLS rows
                    in_seq.astype(f32) * (1.0 / S))                 # mean rows
    pooled = jnp.dot(sel, h, preferred_element_type=f32)            # [2P, H]
    pooled_cls = pooled[0:P, :]
    pooled_mean = pooled[P:2 * P, :]

    # ---- classifier + cross entropy (padded cols carry -1e9 bias -> no softmax effect)
    logits_pad = jnp.dot(pooled_cls, w_cls, preferred_element_type=f32) + b_cls  # [P,H]
    logits_ref[...] = logits_pad

    lab_iota = lax.broadcasted_iota(jnp.int32, (P, H), 1)
    onehot_lab = (lab_iota == lab).astype(f32)                      # [P, H]
    m = jnp.max(logits_pad, axis=1, keepdims=True)
    lse = m + jnp.log(jnp.sum(jnp.exp(logits_pad - m), axis=1, keepdims=True))
    picked = jnp.sum(logits_pad * onehot_lab, axis=1, keepdims=True)
    ce_row = lse - picked                                           # [P, 1]
    rowP = lax.broadcasted_iota(jnp.int32, (P, 1), 0)
    src_ce_real = jnp.sum(jnp.where(rowP < B, ce_row, 0.0)) / B
    src_ce_pert = jnp.sum(jnp.where(jnp.logical_and(rowP >= B, rowP < two_b),
                                    ce_row, 0.0)) / B

    # ---- projector: mean-pool -> linear -> relu -> linear ----
    hm = jnp.maximum(
        jnp.dot(pooled_mean, w_mlp1, preferred_element_type=f32) + b_mlp1, 0.0)
    z = jnp.dot(hm, w_mlp2, preferred_element_type=f32) + b_mlp2    # [P, PROJ]

    # ---- one gram matrix shared by SimCLR (both blocks) and MMD ----
    zsq = z * z
    rsq_col = jnp.sum(zsq, axis=1, keepdims=True)                   # [P, 1]
    rsq_row = lax.dot_general(jnp.ones((1, PROJ), f32), zsq, dot_rr,
                              preferred_element_type=f32)           # [1, P]
    gram = lax.dot_general(z, z, dot_rr, preferred_element_type=f32)  # [P, P]

    # cosine sims via rsqrt on the EUP (eps on squared norm preserves F.normalize)
    inv_col = lax.rsqrt(jnp.maximum(rsq_col, 1e-24))
    inv_row = lax.rsqrt(jnp.maximum(rsq_row, 1e-24))
    sim = gram * inv_col * inv_row                                  # [P, P]

    r = lax.broadcasted_iota(jnp.int32, (P, P), 0)
    c = lax.broadcasted_iota(jnp.int32, (P, P), 1)
    same_block = (r < two_b) == (c < two_b)            # src 2B-block vs tgt 2B-block
    pos_mask = jnp.logical_and(
        same_block, jnp.logical_or(c == r + B, c == r - B)).astype(f32)
    neg_mask = jnp.logical_and(same_block, r != c).astype(f32)
    pos = jnp.sum(sim * pos_mask, axis=1, keepdims=True)            # [P, 1]
    denom = jnp.sum(neg_mask * jnp.exp(sim / temperature), axis=1, keepdims=True)
    per_row = -pos / temperature + jnp.log(denom)                   # [P, 1]
    src_lctr = jnp.sum(jnp.where(rowP < two_b, per_row, 0.0)) / two_b
    tgt_lctr = jnp.sum(jnp.where(rowP >= two_b, per_row, 0.0)) / two_b

    # ---- RBF MMD(src_z_i, tgt_z_i): distances from the same gram, clamped at 0 ----
    d = jnp.maximum(rsq_col + rsq_row - 2.0 * gram, 0.0)
    k = jnp.zeros_like(d)
    for a in MMD_BANDWIDTHS:                                        # 4 exps total
        k = k + jnp.exp(-0.5 * d / a)
    m_xx = jnp.logical_and(r < B, c < B).astype(f32)
    m_yy = jnp.logical_and(
        jnp.logical_and(r >= two_b, r < two_b + B),
        jnp.logical_and(c >= two_b, c < two_b + B)).astype(f32)
    m_xy = jnp.logical_and(
        r < B, jnp.logical_and(c >= two_b, c < two_b + B)).astype(f32)
    mmd = (jnp.sum(k * m_xx) + jnp.sum(k * m_yy)
           - 2.0 * jnp.sum(k * m_xy)) / (B * B)

    # use_ce_perturb = True, use_both_ce_losses = True branch
    total = ((1.0 - lambda_w) * (src_ce_real + src_ce_pert) / 2.0
             + lambda_w * (src_lctr + tgt_lctr) / 2.0
             + lambda_mmd * mmd)

    # ---- assemble the 8-lane loss row once; SINGLE store, no init ----
    lane = lax.broadcasted_iota(jnp.int32, (1, 8), 1)
    row = jnp.where(lane == 0, total,
          jnp.where(lane == 1, src_lctr,
          jnp.where(lane == 2, tgt_lctr,
          jnp.where(lane == 3, src_ce_real,
          jnp.where(lane == 4, src_ce_pert,
          jnp.where(lane == 5, mmd, 0.0))))))
    losses_ref[...] = row


# ---------------------------- params / packing ------------------------------

def init_params(key):
    ks = jax.random.split(key, 5)

    def w(k, shape, scale=0.1):
        return scale * jax.random.normal(k, shape, jnp.float32)

    return {
        "emb":    w(ks[0], (VOCAB, HIDDEN)),
        "w_enc":  w(ks[1], (HIDDEN, HIDDEN)),
        "b_enc":  jnp.zeros((1, HIDDEN), jnp.float32),
        "w_cls":  w(ks[2], (HIDDEN, NUM_CLASSES)),
        "b_cls":  jnp.zeros((1, NUM_CLASSES), jnp.float32),
        "w_mlp1": w(ks[3], (HIDDEN, HIDDEN)),
        "b_mlp1": jnp.zeros((1, HIDDEN), jnp.float32),
        "w_mlp2": w(ks[4], (HIDDEN, PROJ)),
        "b_mlp2": jnp.zeros((1, PROJ), jnp.float32),
    }


def _pad_rows(x, rows):
    return jnp.pad(x, ((0, rows - x.shape[0]), (0, 0)))


def _pad_cols(x, cols, value=0.0):
    return jnp.pad(x, ((0, 0), (0, cols - x.shape[1])), constant_values=value)


def pack_params(params):
    """Pack all parameters into one (176, HIDDEN) f32 slab (one input DMA)."""
    parts = [
        params["emb"],                                              # rows   0:16
        params["w_enc"],                                            # rows  16:48
        _pad_rows(params["b_enc"], 8),                              # rows  48:56
        _pad_cols(params["w_cls"], HIDDEN),                         # rows  56:88
        _pad_rows(_pad_cols(params["b_cls"], HIDDEN, -1e9), 8),     # rows  88:96
        params["w_mlp1"],                                           # rows  96:128
        _pad_rows(params["b_mlp1"], 8),                             # rows 128:136
        params["w_mlp2"],                                           # rows 136:168
        _pad_rows(params["b_mlp2"], 8),                             # rows 168:176
    ]
    packed = jnp.concatenate(parts, axis=0).astype(jnp.float32)
    assert packed.shape == (_PARAM_ROWS, HIDDEN)
    return packed


# ------------------------------------ wrapper --------------------------------

def contrastively_instructed_roberta_forward(
        packed_params,
        src_texts, src_masks, src_texts_perturb, src_masks_perturb,
        tgt_texts, tgt_masks, tgt_texts_perturb, tgt_masks_perturb,
        src_labels, tgt_labels, lambda_w=LAMBDA_W):
    B, S = src_texts.shape
    P = 4 * B
    R = P * S
    lab_off = -(-R // 8) * 8                 # labels section start (8-row aligned)
    data_rows = lab_off + (-(-P // 8) * 8)

    # stack the four branches: [src, src_perturb, tgt, tgt_perturb]
    ids = jnp.concatenate(
        [src_texts, src_texts_perturb, tgt_texts, tgt_texts_perturb],
        axis=0).astype(jnp.int32).reshape(R, 1)
    masks = jnp.concatenate(
        [src_masks, src_masks_perturb, tgt_masks, tgt_masks_perturb],
        axis=0).astype(jnp.float32).reshape(R, 1)
    labels = jnp.concatenate(
        [src_labels, src_labels, tgt_labels, tgt_labels],
        axis=0).astype(jnp.int32).reshape(P, 1)

    # one int32 slab: col0 = ids then labels, col1 = bitcast(float mask)
    col0 = jnp.zeros((data_rows, 1), jnp.int32)
    col0 = col0.at[0:R].set(ids).at[lab_off:lab_off + P].set(labels)
    col1 = jnp.zeros((data_rows, 1), jnp.int32)
    col1 = col1.at[0:R].set(lax.bitcast_convert_type(masks, jnp.int32))
    data = jnp.concatenate([col0, col1], axis=1)

    kernel = functools.partial(
        _fused_kernel, batch=B, seq=S, lab_off=lab_off, temperature=TEMPERATURE,
        lambda_w=float(lambda_w), lambda_mmd=LAMBDA_MMD)

    # Single fused pallas_call: whole forward resident in VMEM, one grid step,
    # exactly 2 input DMAs (data slab + param slab) and 2 outputs.
    # NOTE(v7x): at these toy shapes launch overhead dominates, so grid stays (1,);
    # at real RoBERTa dims add a parallel row-tiled grid axis + vmem_limit_bytes.
    losses, logits_pad = pl.pallas_call(
        kernel,
        grid=(1,),
        in_specs=[
            pl.BlockSpec((data_rows, 2), lambda i: (0, 0)),          # ids/labels/mask
            pl.BlockSpec((_PARAM_ROWS, HIDDEN), lambda i: (0, 0)),   # packed params
        ],
        out_specs=[
            pl.BlockSpec((1, 8), lambda i: (0, 0)),                  # scalar losses
            pl.BlockSpec((P, HIDDEN), lambda i: (0, 0)),             # padded logits
        ],
        out_shape=[
            jax.ShapeDtypeStruct((1, 8), jnp.float32),
            jax.ShapeDtypeStruct((P, HIDDEN), jnp.float32),
        ],
        compiler_params=pltpu.CompilerParams(
            dimension_semantics=("arbitrary",)),
    )(data, packed_params)

    logits_all = logits_pad[:, :NUM_CLASSES]
    data_out = {"total_loss": losses[0, 0],
                "src_ctr_loss": losses[0, 1],
                "tgt_ctr_loss": losses[0, 2],
                "src_ce_loss_real": losses[0, 3],
                "src_ce_loss_perturb": losses[0, 4],
                "mmd": losses[0, 5],
                "src_logits": logits_all[0:B],
                "tgt_logits": logits_all[2 * B:3 * B]}
    ModelEndpoints = namedtuple("ModelEndpoints", sorted(data_out.keys()))
    return ModelEndpoints(**data_out)


# ------------------------------------ main -----------------------------------

if __name__ == "__main__":
    key = jax.random.PRNGKey(0)
    pkey, k0, k1, k2, k3, k4, k5 = jax.random.split(key, 7)
    params = init_params(pkey)
    packed = pack_params(params)

    B = 2
    src_texts = jax.random.randint(k0, (B, SEQ), 0, VOCAB, dtype=jnp.int32)
    src_texts_perturb = jax.random.randint(k1, (B, SEQ), 0, VOCAB, dtype=jnp.int32)
    tgt_texts = jax.random.randint(k2, (B, SEQ), 0, VOCAB, dtype=jnp.int32)
    tgt_texts_perturb = jax.random.randint(k3, (B, SEQ), 0, VOCAB, dtype=jnp.int32)
    src_masks = jnp.ones((B, SEQ), jnp.float32)
    src_masks_perturb = jnp.ones((B, SEQ), jnp.float32)
    tgt_masks = jnp.ones((B, SEQ), jnp.float32)
    tgt_masks_perturb = jnp.ones((B, SEQ), jnp.float32)
    src_labels = jax.random.randint(k4, (B,), 0, NUM_CLASSES, dtype=jnp.int32)
    tgt_labels = jax.random.randint(k5, (B,), 0, NUM_CLASSES, dtype=jnp.int32)

    out = contrastively_instructed_roberta_forward(
        packed,
        src_texts, src_masks, src_texts_perturb, src_masks_perturb,
        tgt_texts, tgt_masks, tgt_texts_perturb, tgt_masks_perturb,
        src_labels, tgt_labels)

    jax.block_until_ready(out.total_loss)
    print("KERNEL_OK")
</pallas_src>

<mosaic_0001>
module attributes {stable_mosaic.version = 11 : i64} {
  func.func @_fused_kernel(%arg0: i32, %arg1: memref<72x2xi32, #tpu.memory_space<vmem>>, %arg2: memref<176x32xf32, #tpu.memory_space<vmem>>, %arg3: memref<1x8xf32, #tpu.memory_space<vmem>>, %arg4: memref<8x32xf32, #tpu.memory_space<vmem>>) attributes {dimension_semantics = [#tpu.dimension_semantics<arbitrary>], iteration_bounds = array<i64: 1>, scalar_prefetch = 0 : i64, scratch_operands = 0 : i64, tpu.core_type = #tpu.core_type<tc>, window_params = [{pipeline_mode = #tpu.pipeline_mode<synchronous>, transform_indices = @transform_0, window_bounds = array<i64: 72, 2>}, {pipeline_mode = #tpu.pipeline_mode<synchronous>, transform_indices = @transform_1, window_bounds = array<i64: 176, 32>}, {pipeline_mode = #tpu.pipeline_mode<synchronous>, transform_indices = @transform_2, window_bounds = array<i64: 1, 8>}, {pipeline_mode = #tpu.pipeline_mode<synchronous>, transform_indices = @transform_3, window_bounds = array<i64: 8, 32>}]} {
    %c0 = arith.constant 0 : index
    %c0_0 = arith.constant 0 : index
    %0 = vector.load %arg2[%c0, %c0_0] : memref<176x32xf32, #tpu.memory_space<vmem>>, vector<16x32xf32>
    %c16 = arith.constant 16 : index
    %c0_1 = arith.constant 0 : index
    %1 = vector.load %arg2[%c16, %c0_1] : memref<176x32xf32, #tpu.memory_space<vmem>>, vector<32x32xf32>
    %c48 = arith.constant 48 : index
    %c0_2 = arith.constant 0 : index
    %2 = vector.load %arg2[%c48, %c0_2] : memref<176x32xf32, #tpu.memory_space<vmem>>, vector<1x32xf32>
    %c56 = arith.constant 56 : index
    %c0_3 = arith.constant 0 : index
    %3 = vector.load %arg2[%c56, %c0_3] : memref<176x32xf32, #tpu.memory_space<vmem>>, vector<32x32xf32>
    %c88 = arith.constant 88 : index
    %c0_4 = arith.constant 0 : index
    %4 = vector.load %arg2[%c88, %c0_4] : memref<176x32xf32, #tpu.memory_space<vmem>>, vector<1x32xf32>
    %c96 = arith.constant 96 : index
    %c0_5 = arith.constant 0 : index
    %5 = vector.load %arg2[%c96, %c0_5] : memref<176x32xf32, #tpu.memory_space<vmem>>, vector<32x32xf32>
    %c128 = arith.constant 128 : index
    %c0_6 = arith.constant 0 : index
    %6 = vector.load %arg2[%c128, %c0_6] : memref<176x32xf32, #tpu.memory_space<vmem>>, vector<1x32xf32>
    %c136 = arith.constant 136 : index
    %c0_7 = arith.constant 0 : index
    %7 = vector.load %arg2[%c136, %c0_7] : memref<176x32xf32, #tpu.memory_space<vmem>>, vector<32x32xf32>
    %c168 = arith.constant 168 : index
    %c0_8 = arith.constant 0 : index
    %8 = vector.load %arg2[%c168, %c0_8] : memref<176x32xf32, #tpu.memory_space<vmem>>, vector<1x32xf32>
    %c0_9 = arith.constant 0 : index
    %c0_10 = arith.constant 0 : index
    %9 = vector.load %arg1[%c0_9, %c0_10] : memref<72x2xi32, #tpu.memory_space<vmem>>, vector<64x1xi32>
    %c0_11 = arith.constant 0 : index
    %c1 = arith.constant 1 : index
    %10 = vector.load %arg1[%c0_11, %c1] : memref<72x2xi32, #tpu.memory_space<vmem>>, vector<64x1xi32>
    %11 = tpu.bitcast %10 : vector<64x1xi32> -> vector<64x1xf32>
    %c64 = arith.constant 64 : index
    %c0_12 = arith.constant 0 : index
    %12 = vector.load %arg1[%c64, %c0_12] : memref<72x2xi32, #tpu.memory_space<vmem>>, vector<8x1xi32>
    %13 = tpu.iota {dimensions = array<i32: 1>} : vector<64x16xi32>
    %14 = vector.broadcast %9 : vector<64x1xi32> to vector<64x16xi32>
    %15 = arith.cmpi eq, %13, %14 : vector<64x16xi32>
    %16 = arith.extui %15 : vector<64x16xi1> to vector<64x16xi32>
    %17 = arith.sitofp %16 : vector<64x16xi32> to vector<64x16xf32>
    %cst = arith.constant dense<0.000000e+00> : vector<64x32xf32>
    %18 = tpu.matmul %17, %0, %cst {dimension_numbers = #tpu.dot_dimension_numbers<[1], [0], [0], [1], [0, 0, 1, 1], [], []>} : vector<64x16xf32>, vector<16x32xf32>, vector<64x32xf32> -> vector<64x32xf32>
    %cst_13 = arith.constant dense<0.000000e+00> : vector<64x32xf32>
    %19 = tpu.matmul %18, %1, %cst_13 {dimension_numbers = #tpu.dot_dimension_numbers<[1], [0], [0], [1], [0, 0, 1, 1], [], []>} : vector<64x32xf32>, vector<32x32xf32>, vector<64x32xf32> -> vector<64x32xf32>
    %20 = vector.broadcast %2 : vector<1x32xf32> to vector<64x32xf32>
    %21 = arith.addf %19, %20 : vector<64x32xf32>
    %22 = math.tanh %21 : vector<64x32xf32>
    %23 = vector.broadcast %11 : vector<64x1xf32> to vector<64x32xf32>
    %24 = arith.mulf %22, %23 : vector<64x32xf32>
    %25 = tpu.iota {dimensions = array<i32: 0>} : vector<16x64xi32>
    %26 = tpu.iota {dimensions = array<i32: 1>} : vector<16x64xi32>
    %c8_i32 = arith.constant 8 : i32
    %27 = vector.broadcast %c8_i32 : i32 to vector<16x64xi32>
    %28 = arith.cmpi slt, %25, %27 : vector<16x64xi32>
    %c8_i32_14 = arith.constant 8 : i32
    %29 = vector.broadcast %c8_i32_14 : i32 to vector<16x64xi32>
    %30 = arith.subi %25, %29 : vector<16x64xi32>
    %31 = arith.select %28, %25, %30 : vector<16x64xi1>, vector<16x64xi32>
    %c8_i32_15 = arith.constant 8 : i32
    %32 = vector.broadcast %c8_i32_15 : i32 to vector<16x64xi32>
    %33 = arith.muli %31, %32 : vector<16x64xi32>
    %34 = arith.cmpi sge, %26, %33 : vector<16x64xi32>
    %c8_i32_16 = arith.constant 8 : i32
    %35 = vector.broadcast %c8_i32_16 : i32 to vector<16x64xi32>
    %36 = arith.addi %33, %35 : vector<16x64xi32>
    %37 = arith.cmpi slt, %26, %36 : vector<16x64xi32>
    %38 = arith.andi %34, %37 : vector<16x64xi1>
    %c8_i32_17 = arith.constant 8 : i32
    %39 = vector.broadcast %c8_i32_17 : i32 to vector<16x64xi32>
    %40 = arith.cmpi slt, %25, %39 : vector<16x64xi32>
    %41 = arith.cmpi eq, %26, %33 : vector<16x64xi32>
    %42 = arith.extui %41 : vector<16x64xi1> to vector<16x64xi32>
    %43 = arith.sitofp %42 : vector<16x64xi32> to vector<16x64xf32>
    %44 = arith.extui %38 : vector<16x64xi1> to vector<16x64xi32>
    %45 = arith.sitofp %44 : vector<16x64xi32> to vector<16x64xf32>
    %cst_18 = arith.constant 1.250000e-01 : f32
    %46 = vector.broadcast %cst_18 : f32 to vector<16x64xf32>
    %47 = arith.mulf %45, %46 : vector<16x64xf32>
    %48 = arith.select %40, %43, %47 : vector<16x64xi1>, vector<16x64xf32>
    %cst_19 = arith.constant dense<0.000000e+00> : vector<16x32xf32>
    %49 = tpu.matmul %48, %24, %cst_19 {dimension_numbers = #tpu.dot_dimension_numbers<[1], [0], [0], [1], [0, 0, 1, 1], [], []>} : vector<16x64xf32>, vector<64x32xf32>, vector<16x32xf32> -> vector<16x32xf32>
    %50 = vector.extract_strided_slice %49 {offsets = [0, 0], sizes = [8, 32], strides = [1, 1]} : vector<16x32xf32> to vector<8x32xf32>
    %51 = vector.extract_strided_slice %49 {offsets = [8, 0], sizes = [8, 32], strides = [1, 1]} : vector<16x32xf32> to vector<8x32xf32>
    %cst_20 = arith.constant dense<0.000000e+00> : vector<8x32xf32>
    %52 = tpu.matmul %50, %3, %cst_20 {dimension_numbers = #tpu.dot_dimension_numbers<[1], [0], [0], [1], [0, 0, 1, 1], [], []>} : vector<8x32xf32>, vector<32x32xf32>, vector<8x32xf32> -> vector<8x32xf32>
    %53 = vector.broadcast %4 : vector<1x32xf32> to vector<8x32xf32>
    %54 = arith.addf %52, %53 : vector<8x32xf32>
    %c0_21 = arith.constant 0 : index
    %c0_22 = arith.constant 0 : index
    %55 = vector.load %arg4[%c0_21, %c0_22] : memref<8x32xf32, #tpu.memory_space<vmem>>, vector<8x32xf32>
    tpu.vector_store %arg4[%c0_21, %c0_22], %54 {strides = array<i32>} : memref<8x32xf32, #tpu.memory_space<vmem>>, vector<8x32xf32>,
    %56 = tpu.iota {dimensions = array<i32: 1>} : vector<8x32xi32>
    %57 = vector.broadcast %12 : vector<8x1xi32> to vector<8x32xi32>
    %58 = arith.cmpi eq, %56, %57 : vector<8x32xi32>
    %59 = arith.extui %58 : vector<8x32xi1> to vector<8x32xi32>
    %60 = arith.sitofp %59 : vector<8x32xi32> to vector<8x32xf32>
    %cst_23 = arith.constant dense<0xFF800000> : vector<8xf32>
    %61 = vector.multi_reduction <maximumf>, %54, %cst_23 [1] : vector<8x32xf32> to vector<8xf32>
    %62 = vector.shape_cast %61 : vector<8xf32> to vector<8x1xf32>
    %63 = vector.broadcast %62 : vector<8x1xf32> to vector<8x32xf32>
    %64 = arith.subf %54, %63 : vector<8x32xf32>
    %65 = math.exp %64 : vector<8x32xf32>
    %cst_24 = arith.constant dense<0.000000e+00> : vector<8xf32>
    %66 = vector.multi_reduction <add>, %65, %cst_24 [1] : vector<8x32xf32> to vector<8xf32>
    %67 = vector.shape_cast %66 : vector<8xf32> to vector<8x1xf32>
    %68 = math.log %67 : vector<8x1xf32>
    %69 = arith.addf %62, %68 : vector<8x1xf32>
    %70 = arith.mulf %54, %60 : vector<8x32xf32>
    %cst_25 = arith.constant dense<0.000000e+00> : vector<8xf32>
    %71 = vector.multi_reduction <add>, %70, %cst_25 [1] : vector<8x32xf32> to vector<8xf32>
    %72 = vector.shape_cast %71 : vector<8xf32> to vector<8x1xf32>
    %73 = arith.subf %69, %72 : vector<8x1xf32>
    %74 = tpu.iota {dimensions = array<i32: 0>} : vector<8x1xi32>
    %c2_i32 = arith.constant 2 : i32
    %75 = vector.broadcast %c2_i32 : i32 to vector<8x1xi32>
    %76 = arith.cmpi slt, %74, %75 : vector<8x1xi32>
    %cst_26 = arith.constant 0.000000e+00 : f32
    %77 = vector.broadcast %cst_26 : f32 to vector<8x1xf32>
    %78 = arith.select %76, %73, %77 : vector<8x1xi1>, vector<8x1xf32>
    %79 = vector.shape_cast %78 : vector<8x1xf32> to vector<1x8x1xf32>
    %cst_27 = arith.constant dense<0.000000e+00> : vector<1xf32>
    %80 = vector.multi_reduction <add>, %79, %cst_27 [1, 2] : vector<1x8x1xf32> to vector<1xf32>
    %81 = vector.shape_cast %80 : vector<1xf32> to vector<1x1x1xf32>
    %82 = vector.extract %81[0, 0, 0] : f32 from vector<1x1x1xf32>
    %cst_28 = arith.constant 2.000000e+00 : f32
    %83 = arith.divf %82, %cst_28 : f32
    %c2_i32_29 = arith.constant 2 : i32
    %84 = vector.broadcast %c2_i32_29 : i32 to vector<8x1xi32>
    %85 = arith.cmpi sge, %74, %84 : vector<8x1xi32>
    %c4_i32 = arith.constant 4 : i32
    %86 = vector.broadcast %c4_i32 : i32 to vector<8x1xi32>
    %87 = arith.cmpi slt, %74, %86 : vector<8x1xi32>
    %88 = arith.andi %85, %87 : vector<8x1xi1>
    %cst_30 = arith.constant 0.000000e+00 : f32
    %89 = vector.broadcast %cst_30 : f32 to vector<8x1xf32>
    %90 = arith.select %88, %73, %89 : vector<8x1xi1>, vector<8x1xf32>
    %91 = vector.shape_cast %90 : vector<8x1xf32> to vector<1x8x1xf32>
    %cst_31 = arith.constant dense<0.000000e+00> : vector<1xf32>
    %92 = vector.multi_reduction <add>, %91, %cst_31 [1, 2] : vector<1x8x1xf32> to vector<1xf32>
    %93 = vector.shape_cast %92 : vector<1xf32> to vector<1x1x1xf32>
    %94 = vector.extract %93[0, 0, 0] : f32 from vector<1x1x1xf32>
    %cst_32 = arith.constant 2.000000e+00 : f32
    %95 = arith.divf %94, %cst_32 : f32
    %cst_33 = arith.constant dense<0.000000e+00> : vector<8x32xf32>
    %96 = tpu.matmul %51, %5, %cst_33 {dimension_numbers = #tpu.dot_dimension_numbers<[1], [0], [0], [1], [0, 0, 1, 1], [], []>} : vector<8x32xf32>, vector<32x32xf32>, vector<8x32xf32> -> vector<8x32xf32>
    %97 = vector.broadcast %6 : vector<1x32xf32> to vector<8x32xf32>
    %98 = arith.addf %96, %97 : vector<8x32xf32>
    %cst_34 = arith.constant 0.000000e+00 : f32
    %99 = vector.broadcast %cst_34 : f32 to vector<8x32xf32>
    %100 = arith.maximumf %98, %99 : vector<8x32xf32>
    %cst_35 = arith.constant dense<0.000000e+00> : vector<8x32xf32>
    %101 = tpu.matmul %100, %7, %cst_35 {dimension_numbers = #tpu.dot_dimension_numbers<[1], [0], [0], [1], [0, 0, 1, 1], [], []>} : vector<8x32xf32>, vector<32x32xf32>, vector<8x32xf32> -> vector<8x32xf32>
    %102 = vector.broadcast %8 : vector<1x32xf32> to vector<8x32xf32>
    %103 = arith.addf %101, %102 : vector<8x32xf32>
    %104 = arith.mulf %103, %103 : vector<8x32xf32>
    %cst_36 = arith.constant dense<0.000000e+00> : vector<8xf32>
    %105 = vector.multi_reduction <add>, %104, %cst_36 [1] : vector<8x32xf32> to vector<8xf32>
    %106 = vector.shape_cast %105 : vector<8xf32> to vector<8x1xf32>
    %cst_37 = arith.constant 1.000000e+00 : f32
    %107 = vector.broadcast %cst_37 : f32 to vector<1x32xf32>
    %cst_38 = arith.constant dense<0.000000e+00> : vector<1x8xf32>
    %108 = tpu.matmul %107, %104, %cst_38 {dimension_numbers = #tpu.dot_dimension_numbers<[1], [1], [0], [0], [0, 0, 1, 0], [], []>} : vector<1x32xf32>, vector<8x32xf32>, vector<1x8xf32> -> vector<1x8xf32>
    %cst_39 = arith.constant dense<0.000000e+00> : vector<8x8xf32>
    %109 = tpu.matmul %103, %103, %cst_39 {dimension_numbers = #tpu.dot_dimension_numbers<[1], [1], [0], [0], [0, 0, 1, 0], [], []>} : vector<8x32xf32>, vector<8x32xf32>, vector<8x8xf32> -> vector<8x8xf32>
    %cst_40 = arith.constant 1.000000e-24 : f32
    %110 = vector.broadcast %cst_40 : f32 to vector<8x1xf32>
    %111 = arith.maximumf %106, %110 : vector<8x1xf32>
    %112 = math.rsqrt %111 : vector<8x1xf32>
    %cst_41 = arith.constant 1.000000e-24 : f32
    %113 = vector.broadcast %cst_41 : f32 to vector<1x8xf32>
    %114 = arith.maximumf %108, %113 : vector<1x8xf32>
    %115 = math.rsqrt %114 : vector<1x8xf32>
    %116 = vector.broadcast %112 : vector<8x1xf32> to vector<8x8xf32>
    %117 = arith.mulf %109, %116 : vector<8x8xf32>
    %118 = vector.broadcast %115 : vector<1x8xf32> to vector<8x8xf32>
    %119 = arith.mulf %117, %118 : vector<8x8xf32>
    %120 = tpu.iota {dimensions = array<i32: 0>} : vector<8x8xi32>
    %121 = tpu.iota {dimensions = array<i32: 1>} : vector<8x8xi32>
    %c4_i32_42 = arith.constant 4 : i32
    %122 = vector.broadcast %c4_i32_42 : i32 to vector<8x8xi32>
    %123 = arith.cmpi slt, %120, %122 : vector<8x8xi32>
    %c4_i32_43 = arith.constant 4 : i32
    %124 = vector.broadcast %c4_i32_43 : i32 to vector<8x8xi32>
    %125 = arith.cmpi slt, %121, %124 : vector<8x8xi32>
    %126 = arith.xori %123, %125 : vector<8x8xi1>
    %cst_44 = arith.constant dense<true> : vector<8x8xi1>
    %127 = arith.xori %126, %cst_44 : vector<8x8xi1>
    %c2_i32_45 = arith.constant 2 : i32
    %128 = vector.broadcast %c2_i32_45 : i32 to vector<8x8xi32>
    %129 = arith.addi %120, %128 : vector<8x8xi32>
    %130 = arith.cmpi eq, %121, %129 : vector<8x8xi32>
    %c2_i32_46 = arith.constant 2 : i32
    %131 = vector.broadcast %c2_i32_46 : i32 to vector<8x8xi32>
    %132 = arith.subi %120, %131 : vector<8x8xi32>
    %133 = arith.cmpi eq, %121, %132 : vector<8x8xi32>
    %134 = arith.ori %130, %133 : vector<8x8xi1>
    %135 = arith.andi %127, %134 : vector<8x8xi1>
    %136 = arith.extui %135 : vector<8x8xi1> to vector<8x8xi32>
    %137 = arith.sitofp %136 : vector<8x8xi32> to vector<8x8xf32>
    %138 = arith.cmpi ne, %120, %121 : vector<8x8xi32>
    %139 = arith.andi %127, %138 : vector<8x8xi1>
    %140 = arith.extui %139 : vector<8x8xi1> to vector<8x8xi32>
    %141 = arith.sitofp %140 : vector<8x8xi32> to vector<8x8xf32>
    %142 = arith.mulf %119, %137 : vector<8x8xf32>
    %cst_47 = arith.constant dense<0.000000e+00> : vector<8xf32>
    %143 = vector.multi_reduction <add>, %142, %cst_47 [1] : vector<8x8xf32> to vector<8xf32>
    %144 = vector.shape_cast %143 : vector<8xf32> to vector<8x1xf32>
    %cst_48 = arith.constant 5.000000e-01 : f32
    %145 = vector.broadcast %cst_48 : f32 to vector<8x8xf32>
    %146 = arith.divf %119, %145 : vector<8x8xf32>
    %147 = math.exp %146 : vector<8x8xf32>
    %148 = arith.mulf %141, %147 : vector<8x8xf32>
    %cst_49 = arith.constant dense<0.000000e+00> : vector<8xf32>
    %149 = vector.multi_reduction <add>, %148, %cst_49 [1] : vector<8x8xf32> to vector<8xf32>
    %150 = vector.shape_cast %149 : vector<8xf32> to vector<8x1xf32>
    %cst_50 = arith.constant 0.000000e+00 : f32
    %151 = vector.broadcast %cst_50 : f32 to vector<8x1xf32>
    %152 = arith.subf %151, %144 : vector<8x1xf32>
    %cst_51 = arith.constant 5.000000e-01 : f32
    %153 = vector.broadcast %cst_51 : f32 to vector<8x1xf32>
    %154 = arith.divf %152, %153 : vector<8x1xf32>
    %155 = math.log %150 : vector<8x1xf32>
    %156 = arith.addf %154, %155 : vector<8x1xf32>
    %c4_i32_52 = arith.constant 4 : i32
    %157 = vector.broadcast %c4_i32_52 : i32 to vector<8x1xi32>
    %158 = arith.cmpi slt, %74, %157 : vector<8x1xi32>
    %cst_53 = arith.constant 0.000000e+00 : f32
    %159 = vector.broadcast %cst_53 : f32 to vector<8x1xf32>
    %160 = arith.select %158, %156, %159 : vector<8x1xi1>, vector<8x1xf32>
    %161 = vector.shape_cast %160 : vector<8x1xf32> to vector<1x8x1xf32>
    %cst_54 = arith.constant dense<0.000000e+00> : vector<1xf32>
    %162 = vector.multi_reduction <add>, %161, %cst_54 [1, 2] : vector<1x8x1xf32> to vector<1xf32>
    %163 = vector.shape_cast %162 : vector<1xf32> to vector<1x1x1xf32>
    %164 = vector.extract %163[0, 0, 0] : f32 from vector<1x1x1xf32>
    %cst_55 = arith.constant 4.000000e+00 : f32
    %165 = arith.divf %164, %cst_55 : f32
    %c4_i32_56 = arith.constant 4 : i32
    %166 = vector.broadcast %c4_i32_56 : i32 to vector<8x1xi32>
    %167 = arith.cmpi sge, %74, %166 : vector<8x1xi32>
    %cst_57 = arith.constant 0.000000e+00 : f32
    %168 = vector.broadcast %cst_57 : f32 to vector<8x1xf32>
    %169 = arith.select %167, %156, %168 : vector<8x1xi1>, vector<8x1xf32>
    %170 = vector.shape_cast %169 : vector<8x1xf32> to vector<1x8x1xf32>
    %cst_58 = arith.constant dense<0.000000e+00> : vector<1xf32>
    %171 = vector.multi_reduction <add>, %170, %cst_58 [1, 2] : vector<1x8x1xf32> to vector<1xf32>
    %172 = vector.shape_cast %171 : vector<1xf32> to vector<1x1x1xf32>
    %173 = vector.extract %172[0, 0, 0] : f32 from vector<1x1x1xf32>
    %cst_59 = arith.constant 4.000000e+00 : f32
    %174 = arith.divf %173, %cst_59 : f32
    %175 = vector.broadcast %106 : vector<8x1xf32> to vector<8x8xf32>
    %176 = vector.broadcast %108 : vector<1x8xf32> to vector<8x8xf32>
    %177 = arith.addf %175, %176 : vector<8x8xf32>
    %cst_60 = arith.constant 2.000000e+00 : f32
    %178 = vector.broadcast %cst_60 : f32 to vector<8x8xf32>
    %179 = arith.mulf %178, %109 : vector<8x8xf32>
    %180 = arith.subf %177, %179 : vector<8x8xf32>
    %cst_61 = arith.constant 0.000000e+00 : f32
    %181 = vector.broadcast %cst_61 : f32 to vector<8x8xf32>
    %182 = arith.maximumf %180, %181 : vector<8x8xf32>
    %cst_62 = arith.constant 0.000000e+00 : f32
    %183 = vector.broadcast %cst_62 : f32 to vector<8x8xf32>
    %cst_63 = arith.constant -5.000000e-01 : f32
    %184 = vector.broadcast %cst_63 : f32 to vector<8x8xf32>
    %185 = arith.mulf %184, %182 : vector<8x8xf32>
    %cst_64 = arith.constant 1.000000e+01 : f32
    %186 = vector.broadcast %cst_64 : f32 to vector<8x8xf32>
    %187 = arith.divf %185, %186 : vector<8x8xf32>
    %188 = math.exp %187 : vector<8x8xf32>
    %189 = arith.addf %183, %188 : vector<8x8xf32>
    %cst_65 = arith.constant -5.000000e-01 : f32
    %190 = vector.broadcast %cst_65 : f32 to vector<8x8xf32>
    %191 = arith.mulf %190, %182 : vector<8x8xf32>
    %cst_66 = arith.constant 1.500000e+01 : f32
    %192 = vector.broadcast %cst_66 : f32 to vector<8x8xf32>
    %193 = arith.divf %191, %192 : vector<8x8xf32>
    %194 = math.exp %193 : vector<8x8xf32>
    %195 = arith.addf %189, %194 : vector<8x8xf32>
    %cst_67 = arith.constant -5.000000e-01 : f32
    %196 = vector.broadcast %cst_67 : f32 to vector<8x8xf32>
    %197 = arith.mulf %196, %182 : vector<8x8xf32>
    %cst_68 = arith.constant 2.000000e+01 : f32
    %198 = vector.broadcast %cst_68 : f32 to vector<8x8xf32>
    %199 = arith.divf %197, %198 : vector<8x8xf32>
    %200 = math.exp %199 : vector<8x8xf32>
    %201 = arith.addf %195, %200 : vector<8x8xf32>
    %cst_69 = arith.constant -5.000000e-01 : f32
    %202 = vector.broadcast %cst_69 : f32 to vector<8x8xf32>
    %203 = arith.mulf %202, %182 : vector<8x8xf32>
    %cst_70 = arith.constant 5.000000e+01 : f32
    %204 = vector.broadcast %cst_70 : f32 to vector<8x8xf32>
    %205 = arith.divf %203, %204 : vector<8x8xf32>
    %206 = math.exp %205 : vector<8x8xf32>
    %207 = arith.addf %201, %206 : vector<8x8xf32>
    %c2_i32_71 = arith.constant 2 : i32
    %208 = vector.broadcast %c2_i32_71 : i32 to vector<8x8xi32>
    %209 = arith.cmpi slt, %120, %208 : vector<8x8xi32>
    %c2_i32_72 = arith.constant 2 : i32
    %210 = vector.broadcast %c2_i32_72 : i32 to vector<8x8xi32>
    %211 = arith.cmpi slt, %121, %210 : vector<8x8xi32>
    %212 = arith.andi %209, %211 : vector<8x8xi1>
    %213 = arith.extui %212 : vector<8x8xi1> to vector<8x8xi32>
    %214 = arith.sitofp %213 : vector<8x8xi32> to vector<8x8xf32>
    %c4_i32_73 = arith.constant 4 : i32
    %215 = vector.broadcast %c4_i32_73 : i32 to vector<8x8xi32>
    %216 = arith.cmpi sge, %120, %215 : vector<8x8xi32>
    %c6_i32 = arith.constant 6 : i32
    %217 = vector.broadcast %c6_i32 : i32 to vector<8x8xi32>
    %218 = arith.cmpi slt, %120, %217 : vector<8x8xi32>
    %219 = arith.andi %216, %218 : vector<8x8xi1>
    %c4_i32_74 = arith.constant 4 : i32
    %220 = vector.broadcast %c4_i32_74 : i32 to vector<8x8xi32>
    %221 = arith.cmpi sge, %121, %220 : vector<8x8xi32>
    %c6_i32_75 = arith.constant 6 : i32
    %222 = vector.broadcast %c6_i32_75 : i32 to vector<8x8xi32>
    %223 = arith.cmpi slt, %121, %222 : vector<8x8xi32>
    %224 = arith.andi %221, %223 : vector<8x8xi1>
    %225 = arith.andi %219, %224 : vector<8x8xi1>
    %226 = arith.extui %225 : vector<8x8xi1> to vector<8x8xi32>
    %227 = arith.sitofp %226 : vector<8x8xi32> to vector<8x8xf32>
    %c2_i32_76 = arith.constant 2 : i32
    %228 = vector.broadcast %c2_i32_76 : i32 to vector<8x8xi32>
    %229 = arith.cmpi slt, %120, %228 : vector<8x8xi32>
    %c4_i32_77 = arith.constant 4 : i32
    %230 = vector.broadcast %c4_i32_77 : i32 to vector<8x8xi32>
    %231 = arith.cmpi sge, %121, %230 : vector<8x8xi32>
    %c6_i32_78 = arith.constant 6 : i32
    %232 = vector.broadcast %c6_i32_78 : i32 to vector<8x8xi32>
    %233 = arith.cmpi slt, %121, %232 : vector<8x8xi32>
    %234 = arith.andi %231, %233 : vector<8x8xi1>
    %235 = arith.andi %229, %234 : vector<8x8xi1>
    %236 = arith.extui %235 : vector<8x8xi1> to vector<8x8xi32>
    %237 = arith.sitofp %236 : vector<8x8xi32> to vector<8x8xf32>
    %238 = arith.mulf %207, %214 : vector<8x8xf32>
    %239 = vector.shape_cast %238 : vector<8x8xf32> to vector<1x8x8xf32>
    %cst_79 = arith.constant dense<0.000000e+00> : vector<1xf32>
    %240 = vector.multi_reduction <add>, %239, %cst_79 [1, 2] : vector<1x8x8xf32> to vector<1xf32>
    %241 = vector.shape_cast %240 : vector<1xf32> to vector<1x1x1xf32>
    %242 = vector.extract %241[0, 0, 0] : f32 from vector<1x1x1xf32>
    %243 = arith.mulf %207, %227 : vector<8x8xf32>
    %244 = vector.shape_cast %243 : vector<8x8xf32> to vector<1x8x8xf32>
    %cst_80 = arith.constant dense<0.000000e+00> : vector<1xf32>
    %245 = vector.multi_reduction <add>, %244, %cst_80 [1, 2] : vector<1x8x8xf32> to vector<1xf32>
    %246 = vector.shape_cast %245 : vector<1xf32> to vector<1x1x1xf32>
    %247 = vector.extract %246[0, 0, 0] : f32 from vector<1x1x1xf32>
    %248 = arith.addf %242, %247 : f32
    %249 = arith.mulf %207, %237 : vector<8x8xf32>
    %250 = vector.shape_cast %249 : vector<8x8xf32> to vector<1x8x8xf32>
    %cst_81 = arith.constant dense<0.000000e+00> : vector<1xf32>
    %251 = vector.multi_reduction <add>, %250, %cst_81 [1, 2] : vector<1x8x8xf32> to vector<1xf32>
    %252 = vector.shape_cast %251 : vector<1xf32> to vector<1x1x1xf32>
    %253 = vector.extract %252[0, 0, 0] : f32 from vector<1x1x1xf32>
    %cst_82 = arith.constant 2.000000e+00 : f32
    %254 = arith.mulf %cst_82, %253 : f32
    %255 = arith.subf %248, %254 : f32
    %cst_83 = arith.constant 4.000000e+00 : f32
    %256 = arith.divf %255, %cst_83 : f32
    %257 = arith.addf %83, %95 : f32
    %cst_84 = arith.constant 5.000000e-01 : f32
    %258 = arith.mulf %cst_84, %257 : f32
    %cst_85 = arith.constant 2.000000e+00 : f32
    %259 = arith.divf %258, %cst_85 : f32
    %260 = arith.addf %165, %174 : f32
    %cst_86 = arith.constant 5.000000e-01 : f32
    %261 = arith.mulf %cst_86, %260 : f32
    %cst_87 = arith.constant 2.000000e+00 : f32
    %262 = arith.divf %261, %cst_87 : f32
    %263 = arith.addf %259, %262 : f32
    %cst_88 = arith.constant 1.000000e+00 : f32
    %264 = arith.mulf %cst_88, %256 : f32
    %265 = arith.addf %263, %264 : f32
    %266 = tpu.iota {dimensions = array<i32: 1>} : vector<1x8xi32>
    %c0_i32 = arith.constant 0 : i32
    %267 = vector.broadcast %c0_i32 : i32 to vector<1x8xi32>
    %268 = arith.cmpi eq, %266, %267 : vector<1x8xi32>
    %c1_i32 = arith.constant 1 : i32
    %269 = vector.broadcast %c1_i32 : i32 to vector<1x8xi32>
    %270 = arith.cmpi eq, %266, %269 : vector<1x8xi32>
    %c2_i32_89 = arith.constant 2 : i32
    %271 = vector.broadcast %c2_i32_89 : i32 to vector<1x8xi32>
    %272 = arith.cmpi eq, %266, %271 : vector<1x8xi32>
    %c3_i32 = arith.constant 3 : i32
    %273 = vector.broadcast %c3_i32 : i32 to vector<1x8xi32>
    %274 = arith.cmpi eq, %266, %273 : vector<1x8xi32>
    %c4_i32_90 = arith.constant 4 : i32
    %275 = vector.broadcast %c4_i32_90 : i32 to vector<1x8xi32>
    %276 = arith.cmpi eq, %266, %275 : vector<1x8xi32>
    %c5_i32 = arith.constant 5 : i32
    %277 = vector.broadcast %c5_i32 : i32 to vector<1x8xi32>
    %278 = arith.cmpi eq, %266, %277 : vector<1x8xi32>
    %cst_91 = arith.constant 0.000000e+00 : f32
    %279 = vector.broadcast %256 : f32 to vector<1x8xf32>
    %280 = vector.broadcast %cst_91 : f32 to vector<1x8xf32>
    %281 = arith.select %278, %279, %280 : vector<1x8xi1>, vector<1x8xf32>
    %282 = vector.broadcast %95 : f32 to vector<1x8xf32>
    %283 = arith.select %276, %282, %281 : vector<1x8xi1>, vector<1x8xf32>
    %284 = vector.broadcast %83 : f32 to vector<1x8xf32>
    %285 = arith.select %274, %284, %283 : vector<1x8xi1>, vector<1x8xf32>
    %286 = vector.broadcast %174 : f32 to vector<1x8xf32>
    %287 = arith.select %272, %286, %285 : vector<1x8xi1>, vector<1x8xf32>
    %288 = vector.broadcast %165 : f32 to vector<1x8xf32>
    %289 = arith.select %270, %288, %287 : vector<1x8xi1>, vector<1x8xf32>
    %290 = vector.broadcast %265 : f32 to vector<1x8xf32>
    %291 = arith.select %268, %290, %289 : vector<1x8xi1>, vector<1x8xf32>
    %c0_92 = arith.constant 0 : index
    %c0_93 = arith.constant 0 : index
    %292 = vector.load %arg3[%c0_92, %c0_93] : memref<1x8xf32, #tpu.memory_space<vmem>>, vector<1x8xf32>
    tpu.vector_store %arg3[%c0_92, %c0_93], %291 {strides = array<i32>} : memref<1x8xf32, #tpu.memory_space<vmem>>, vector<1x8xf32>,
    return
  }
  func.func @transform_0(%arg0: i32) -> (i32, i32) {
    %c0_i32 = arith.constant 0 : i32
    %c0_i32_0 = arith.constant 0 : i32
    %c0_i32_1 = arith.constant 0 : i32
    return %c0_i32, %c0_i32_0 : i32, i32
  }
  func.func @transform_1(%arg0: i32) -> (i32, i32) {
    %c0_i32 = arith.constant 0 : i32
    %c0_i32_0 = arith.constant 0 : i32
    %c0_i32_1 = arith.constant 0 : i32
    return %c0_i32, %c0_i32_0 : i32, i32
  }
  func.func @transform_2(%arg0: i32) -> (i32, i32) {
    %c0_i32 = arith.constant 0 : i32
    %c0_i32_0 = arith.constant 0 : i32
    %c0_i32_1 = arith.constant 0 : i32
    return %c0_i32, %c0_i32_0 : i32, i32
  }
  func.func @transform_3(%arg0: i32) -> (i32, i32) {
    %c0_i32 = arith.constant 0 : i32
    %c0_i32_0 = arith.constant 0 : i32
    %c0_i32_1 = arith.constant 0 : i32
    return %c0_i32, %c0_i32_0 : i32, i32
  }
}

</mosaic_0001>

<llo_original>
// kernel: tpu_custom_call.1
$region0: #{tpu_custom_call.1}
  #allocation0 [shape = 'u32[]', space=smem, size = 0x4, offset = 0x4, fixed_abs, tag = 'smem constant byte address 0x4 - core index']
  #allocation1 [shape = 'u32[144,128]{1,0:T(1,128)}', space=vmem, size = 0x12000, scoped, tag = 'internal scratch']
  %s0 = inlined_call_operand.vmem [shape: s32[72,2], index: 0, kind: input, shape index: {}]
  %s1 = inlined_call_operand.vmem [shape: f32[176,32], index: 1, kind: input, shape index: {}]
  %s2 = inlined_call_operand.hbm [shape: f32[1,8], index: 2, kind: output, shape index: {0}]
  %s3 = inlined_call_operand.hbm [shape: f32[8,32], index: 3, kind: output, shape index: {1}]
  %4 = xla_tuple %s2, %s3
  %s5 = sld [smem:[#allocation0]]
  $region26: #{tpu_custom_call.1} parent=0
    _
  %s7 = ssub.s32 1, %s5
  %s8 = scalar_select 0, %s7, %s5
  $region1: #{tpu_custom_call.1} parent=0
    #allocation2 [shape = 'u8[512]{0}', space=vmem, size = 0x400, scoped, tag = 'output window, operand 0, single buffered']
    #allocation3 [shape = 's32[1]{0}', space=sflag, size = 0x4, scoped, tag = 'scoped memory for tpu_custom_call.1']
    #allocation4 [shape = 'u8[4096]{0}', space=vmem, size = 0x1000, scoped, tag = 'output window, operand 1, single buffered']
    #allocation5 [shape = 's32[1]{0}', space=sflag, size = 0x4, scoped, tag = 'scoped memory for tpu_custom_call.1']
    %9 = vsyncpa [#allocation3], 0
    %10 = vsyncpa [#allocation5], 0
    // Predicated region
    $region2: #{tpu_custom_call.1} parent=1 // pred_check
      _
    $region3: #{tpu_custom_call.1} parent=1 // pred_check_branch
      %12 = sbr.rel (0) target = $region5
    $region4: #{tpu_custom_call.1} parent=1 // pred_region
      _
    $region5: #{tpu_custom_call.1} parent=1 // pred_fallthru
      _
    // Predicated region
    $region6: #{tpu_custom_call.1} parent=1 // pred_check
      _
    $region7: #{tpu_custom_call.1} parent=1 // pred_check_branch
      %14 = sbr.rel (0) target = $region9
    $region8: #{tpu_custom_call.1} parent=1 // pred_region
      _
    $region9: #{tpu_custom_call.1} parent=1 // pred_fallthru
      _
    %v15 = vld [vmem:[%s1] sm:$0xff]
    %v16 = vld [vmem:[%s1 + $0x8] sm:$0xff]
    %v17 = vld [vmem:[%s1 + $0x10] sm:$0xff]
    %v18 = vld [vmem:[%s1 + $0x18] sm:$0xff]
    %v19 = vld [vmem:[%s1 + $0x20] sm:$0xff]
    %v20 = vld [vmem:[%s1 + $0x28] sm:$0xff]
    %v21 = vld [vmem:[%s1 + $0x30] sm:$0x1]
    %v22 = vld [vmem:[%s1 + $0x38] sm:$0xff]
    %v23 = vld [vmem:[%s1 + $0x40] sm:$0xff]
    %v24 = vld [vmem:[%s1 + $0x48] sm:$0xff]
    %v25 = vld [vmem:[%s1 + $0x50] sm:$0xff]
    %v26 = vld [vmem:[%s1 + $0x58] sm:$0x1]
    %v27 = vld [vmem:[%s1 + $0x60] sm:$0xff]
    %v28 = vld [vmem:[%s1 + $0x68] sm:$0xff]
    %v29 = vld [vmem:[%s1 + $0x70] sm:$0xff]
    %v30 = vld [vmem:[%s1 + $0x78] sm:$0xff]
    %v31 = vld [vmem:[%s1 + $0x80] sm:$0x1]
    %v32 = vld [vmem:[%s1 + $0x88] sm:$0xff]
    %v33 = vld [vmem:[%s1 + $0x90] sm:$0xff]
    %v34 = vld [vmem:[%s1 + $0x98] sm:$0xff]
    %v35 = vld [vmem:[%s1 + $0xa0] sm:$0xff]
    %v36 = vld [vmem:[%s1 + $0xa8] sm:$0x1]
    %v37 = vld [vmem:[%s0] sm:$0xff]
    %v38 = vld [vmem:[%s0 + $0x8] sm:$0xff]
    %v39 = vld [vmem:[%s0 + $0x10] sm:$0xff]
    %v40 = vld [vmem:[%s0 + $0x18] sm:$0xff]
    %v41 = vld [vmem:[%s0 + $0x20] sm:$0xff]
    %v42 = vld [vmem:[%s0 + $0x28] sm:$0xff]
    %v43 = vld [vmem:[%s0 + $0x30] sm:$0xff]
    %v44 = vld [vmem:[%s0 + $0x38] sm:$0xff]
    %v45 = vld [vmem:[%s0 + $0x40] sm:$0xff]
    %v46 = vlaneseq
    %v47 = vand.u32 %v46, 127
    %48 = vset.pattern.permute.xlu0 0
    %49 = vperm.xlu0 %48, %v37
    %v50 = vpop.permute.xlu0 %49
    %51 = vset.pattern.permute.xlu0 0
    %52 = vperm.xlu0 %51, %v38
    %v53 = vpop.permute.xlu0 %52
    %54 = vset.pattern.permute.xlu0 0
    %55 = vperm.xlu0 %54, %v39
    %v56 = vpop.permute.xlu0 %55
    %57 = vset.pattern.permute.xlu0 0
    %58 = vperm.xlu0 %57, %v40
    %v59 = vpop.permute.xlu0 %58
    %60 = vset.pattern.permute.xlu0 0
    %61 = vperm.xlu0 %60, %v41
    %v62 = vpop.permute.xlu0 %61
    %63 = vset.pattern.permute.xlu0 0
    %64 = vperm.xlu0 %63, %v42
    %v65 = vpop.permute.xlu0 %64
    %66 = vset.pattern.permute.xlu0 0
    %67 = vperm.xlu0 %66, %v43
    %v68 = vpop.permute.xlu0 %67
    %69 = vset.pattern.permute.xlu0 0
    %70 = vperm.xlu0 %69, %v44
    %v71 = vpop.permute.xlu0 %70
    %vm72 = vcmp.eq.s32.totalorder %v47, %v50
    %vm73 = vcmp.eq.s32.totalorder %v47, %v53
    %vm74 = vcmp.eq.s32.totalorder %v47, %v56
    %vm75 = vcmp.eq.s32.totalorder %v47, %v59
    %vm76 = vcmp.eq.s32.totalorder %v47, %v62
    %vm77 = vcmp.eq.s32.totalorder %v47, %v65
    %vm78 = vcmp.eq.s32.totalorder %v47, %v68
    %vm79 = vcmp.eq.s32.totalorder %v47, %v71
    %v80 = vsel %vm72, 1, 0
    %v81 = vsel %vm73, 1, 0
    %v82 = vsel %vm74, 1, 0
    %v83 = vsel %vm75, 1, 0
    %v84 = vsel %vm76, 1, 0
    %v85 = vsel %vm77, 1, 0
    %v86 = vsel %vm78, 1, 0
    %v87 = vsel %vm79, 1, 0
    %v88 = vcvt.s32.f32 %v80
    %v89 = vcvt.s32.f32 %v81
    %v90 = vcvt.s32.f32 %v82
    %v91 = vcvt.s32.f32 %v83
    %v92 = vcvt.s32.f32 %v84
    %v93 = vcvt.s32.f32 %v85
    %v94 = vcvt.s32.f32 %v86
    %v95 = vcvt.s32.f32 %v87
    %vm96 = vcmask 130048
    %v98 = vsel %vm96, %v88, 0
    %v101 = vsel %vm96, %v89, 0
    %v104 = vsel %vm96, %v90, 0
    %v107 = vsel %vm96, %v91, 0
    %v110 = vsel %vm96, %v92, 0
    %v113 = vsel %vm96, %v93, 0
    %v116 = vsel %vm96, %v94, 0
    %v119 = vsel %vm96, %v95, 0
    %121 = vmatprep.subr.mxu0 0.0
    %122 = vmatpush1.msra.mxu0 %v15
    %123 = vmatprep.subr.mxu0 0.0
    %124 = vmatpush1.msra.mxu0 %v16
    %125 = vmatprep.subr.mxu0 0.0
    %126 = vmatpush1.msra.mxu0 0.0
    %127 = vmatprep.subr.mxu0 0.0
    %128 = vmatpush1.msra.mxu0 0.0
    %129 = vmatprep.subr.mxu0 0.0
    %130 = vmatpush1.msra.mxu0 0.0
    %131 = vmatprep.subr.mxu0 0.0
    %132 = vmatpush1.msra.mxu0 0.0
    %133 = vmatprep.subr.mxu0 0.0
    %134 = vmatpush1.msra.mxu0 0.0
    %135 = vmatprep.subr.mxu0 0.0
    %136 = vmatpush1.msra.mxu0 0.0
    %137 = vmatprep.subr.mxu0 0.0
    %138 = vmatpush1.msra.mxu0 0.0
    %139 = vmatprep.subr.mxu0 0.0
    %140 = vmatpush1.msra.mxu0 0.0
    %141 = vmatprep.subr.mxu0 0.0
    %142 = vmatpush1.msra.mxu0 0.0
    %143 = vmatprep.subr.mxu0 0.0
    %144 = vmatpush1.msra.mxu0 0.0
    %145 = vmatprep.subr.mxu0 0.0
    %146 = vmatpush1.msra.mxu0 0.0
    %147 = vmatprep.subr.mxu0 0.0
    %148 = vmatpush1.msra.mxu0 0.0
    %149 = vmatprep.subr.mxu0 0.0
    %150 = vmatpush1.msra.mxu0 0.0
    %151 = vmatprep.subr.mxu0 0.0
    %152 = vmatpush1.msra.mxu0 0.0
    %153 = vmatprep.subr.mxu0 0.0
    %154 = vmatpush1.msra.mxu0 0.0
    %155 = vmatprep.subr.mxu0 0.0
    %156 = vmatpush1.msra.mxu0 0.0
    %157 = vmatprep.subr.mxu0 0.0
    %158 = vmatpush1.msra.mxu0 0.0
    %159 = vmatprep.subr.mxu0 0.0
    %160 = vmatpush1.msra.mxu0 0.0
    %161 = vmatprep.subr.mxu0 0.0
    %162 = vmatpush1.msra.mxu0 0.0
    %163 = vmatprep.subr.mxu0 0.0
    %164 = vmatpush1.msra.mxu0 0.0
    %165 = vmatprep.subr.mxu0 0.0
    %166 = vmatpush1.msra.mxu0 0.0
    %167 = vmatprep.subr.mxu0 0.0
    %168 = vmatpush1.msra.mxu0 0.0
    %169 = vmatprep.subr.mxu0 0.0
    %170 = vmatpush1.msra.mxu0 0.0
    %171 = vmatprep.subr.mxu0 0.0
    %172 = vmatpush1.msra.mxu0 0.0
    %173 = vmatprep.subr.mxu0 0.0
    %174 = vmatpush1.msra.mxu0 0.0
    %175 = vmatprep.subr.mxu0 0.0
    %176 = vmatpush1.msra.mxu0 0.0
    %177 = vmatprep.subr.mxu0 0.0
    %178 = vmatpush1.msra.mxu0 0.0
    %179 = vmatprep.subr.mxu0 0.0
    %180 = vmatpush1.msra.mxu0 0.0
    %181 = vmatprep.subr.mxu0 0.0
    %182 = vmatpush1.msra.mxu0 0.0
    %183 = vmatprep.subr.mxu0 0.0
    %184 = vmatpush1.msra.mxu0 0.0
    %185 = vmatprep.mubr.f32.mxu0 0.0
    %186 = vmatmul.mubr.f32.gmra.mrb[0].mxu0 %v98
    %v187 = vpop.f32.mrb[0].mxu0
    %v188 = vadd.f32 0.0, %v187
    %v189 = vpop.f32.mrb[0].mxu0
    %190 = vmatprep.mubr.f32.mxu0 0.0
    %191 = vmatmul.mubr.f32.gmra.mrb[0].mxu0 %v101
    %v192 = vpop.f32.mrb[0].mxu0
    %v193 = vadd.f32 0.0, %v192
    %v194 = vpop.f32.mrb[0].mxu0
    %195 = vmatprep.mubr.f32.mxu0 0.0
    %196 = vmatmul.mubr.f32.gmra.mrb[0].mxu0 %v104
    %v197 = vpop.f32.mrb[0].mxu0
    %v198 = vadd.f32 0.0, %v197
    %v199 = vpop.f32.mrb[0].mxu0
    %200 = vmatprep.mubr.f32.mxu0 0.0
    %201 = vmatmul.mubr.f32.gmra.mrb[0].mxu0 %v107
    %v202 = vpop.f32.mrb[0].mxu0
    %v203 = vadd.f32 0.0, %v202
    %v204 = vpop.f32.mrb[0].mxu0
    %205 = vmatprep.mubr.f32.mxu0 0.0
    %206 = vmatmul.mubr.f32.gmra.mrb[0].mxu0 %v110
    %v207 = vpop.f32.mrb[0].mxu0
    %v208 = vadd.f32 0.0, %v207
    %v209 = vpop.f32.mrb[0].mxu0
    %210 = vmatprep.mubr.f32.mxu0 0.0
    %211 = vmatmul.mubr.f32.gmra.mrb[0].mxu0 %v113
    %v212 = vpop.f32.mrb[0].mxu0
    %v213 = vadd.f32 0.0, %v212
    %v214 = vpop.f32.mrb[0].mxu0
    %215 = vmatprep.mubr.f32.mxu0 0.0
    %216 = vmatmul.mubr.f32.gmra.mrb[0].mxu0 %v116
    %v217 = vpop.f32.mrb[0].mxu0
    %v218 = vadd.f32 0.0, %v217
    %v219 = vpop.f32.mrb[0].mxu0
    %220 = vmatprep.mubr.f32.mxu0 0.0
    %221 = vmatmul.mubr.f32.gmra.mrb[0].mxu0 %v119
    %v222 = vpop.f32.mrb[0].mxu0
    %v223 = vadd.f32 0.0, %v222
    %v224 = vpop.f32.mrb[0].mxu0
    %225 = vdwg.mxu0
    %v226 = vlaneseq
    %v227 = vshrl.u32 %v226, 7
    %v228 = vsub.s32 0, %v227
    %v229 = vrot.slane %v21, %v228
    %vm230 = vcmask 261120
    %v232 = vsel %vm230, %v188, 0
    %v235 = vsel %vm230, %v193, 0
    %v238 = vsel %vm230, %v198, 0
    %v241 = vsel %vm230, %v203, 0
    %v244 = vsel %vm230, %v208, 0
    %v247 = vsel %vm230, %v213, 0
    %v250 = vsel %vm230, %v218, 0
    %v253 = vsel %vm230, %v223, 0
    %255 = vmatprep.subr.mxu0 0.0
    %256 = vmatpush1.msra.mxu0 %v17
    %257 = vmatprep.subr.mxu0 0.0
    %258 = vmatpush1.msra.mxu0 %v18
    %259 = vmatprep.subr.mxu0 0.0
    %260 = vmatpush1.msra.mxu0 %v19
    %261 = vmatprep.subr.mxu0 0.0
    %262 = vmatpush1.msra.mxu0 %v20
    %263 = vmatprep.subr.mxu0 0.0
    %264 = vmatpush1.msra.mxu0 0.0
    %265 = vmatprep.subr.mxu0 0.0
    %266 = vmatpush1.msra.mxu0 0.0
    %267 = vmatprep.subr.mxu0 0.0
    %268 = vmatpush1.msra.mxu0 0.0
    %269 = vmatprep.subr.mxu0 0.0
    %270 = vmatpush1.msra.mxu0 0.0
    %271 = vmatprep.subr.mxu0 0.0
    %272 = vmatpush1.msra.mxu0 0.0
    %273 = vmatprep.subr.mxu0 0.0
    %274 = vmatpush1.msra.mxu0 0.0
    %275 = vmatprep.subr.mxu0 0.0
    %276 = vmatpush1.msra.mxu0 0.0
    %277 = vmatprep.subr.mxu0 0.0
    %278 = vmatpush1.msra.mxu0 0.0
    %279 = vmatprep.subr.mxu0 0.0
    %280 = vmatpush1.msra.mxu0 0.0
    %281 = vmatprep.subr.mxu0 0.0
    %282 = vmatpush1.msra.mxu0 0.0
    %283 = vmatprep.subr.mxu0 0.0
    %284 = vmatpush1.msra.mxu0 0.0
    %285 = vmatprep.subr.mxu0 0.0
    %286 = vmatpush1.msra.mxu0 0.0
    %287 = vmatprep.subr.mxu0 0.0
    %288 = vmatpush1.msra.mxu0 0.0
    %289 = vmatprep.subr.mxu0 0.0
    %290 = vmatpush1.msra.mxu0 0.0
    %291 = vmatprep.subr.mxu0 0.0
    %292 = vmatpush1.msra.mxu0 0.0
    %293 = vmatprep.subr.mxu0 0.0
    %294 = vmatpush1.msra.mxu0 0.0
    %295 = vmatprep.subr.mxu0 0.0
    %296 = vmatpush1.msra.mxu0 0.0
    %297 = vmatprep.subr.mxu0 0.0
    %298 = vmatpush1.msra.mxu0 0.0
    %299 = vmatprep.subr.mxu0 0.0
    %300 = vmatpush1.msra.mxu0 0.0
    %301 = vmatprep.subr.mxu0 0.0
    %302 = vmatpush1.msra.mxu0 0.0
    %303 = vmatprep.subr.mxu0 0.0
    %304 = vmatpush1.msra.mxu0 0.0
    %305 = vmatprep.subr.mxu0 0.0
    %306 = vmatpush1.msra.mxu0 0.0
    %307 = vmatprep.subr.mxu0 0.0
    %308 = vmatpush1.msra.mxu0 0.0
    %309 = vmatprep.subr.mxu0 0.0
    %310 = vmatpush1.msra.mxu0 0.0
    %311 = vmatprep.subr.mxu0 0.0
    %312 = vmatpush1.msra.mxu0 0.0
    %313 = vmatprep.subr.mxu0 0.0
    %314 = vmatpush1.msra.mxu0 0.0
    %315 = vmatprep.subr.mxu0 0.0
    %316 = vmatpush1.msra.mxu0 0.0
    %317 = vmatprep.subr.mxu0 0.0
    %318 = vmatpush1.msra.mxu0 0.0
    %319 = vmatprep.mubr.f32.mxu0 0.0
    %320 = vmatmul.mubr.f32.gmra.mrb[0].mxu0 %v232
    %v321 = vpop.f32.mrb[0].mxu0
    %v322 = vadd.f32 %v229, %v321
    %v323 = vpop.f32.mrb[0].mxu0
    %324 = vmatprep.mubr.f32.mxu0 0.0
    %325 = vmatmul.mubr.f32.gmra.mrb[0].mxu0 %v235
    %v326 = vpop.f32.mrb[0].mxu0
    %v327 = vadd.f32 %v229, %v326
    %v328 = vpop.f32.mrb[0].mxu0
    %329 = vmatprep.mubr.f32.mxu0 0.0
    %330 = vmatmul.mubr.f32.gmra.mrb[0].mxu0 %v238
    %v331 = vpop.f32.mrb[0].mxu0
    %v332 = vadd.f32 %v229, %v331
    %v333 = vpop.f32.mrb[0].mxu0
    %334 = vmatprep.mubr.f32.mxu0 0.0
    %335 = vmatmul.mubr.f32.gmra.mrb[0].mxu0 %v241
    %v336 = vpop.f32.mrb[0].mxu0
    %v337 = vadd.f32 %v229, %v336
    %v338 = vpop.f32.mrb[0].mxu0
    %339 = vmatprep.mubr.f32.mxu0 0.0
    %340 = vmatmul.mubr.f32.gmra.mrb[0].mxu0 %v244
    %v341 = vpop.f32.mrb[0].mxu0
    %v342 = vadd.f32 %v229, %v341
    %v343 = vpop.f32.mrb[0].mxu0
    %344 = vmatprep.mubr.f32.mxu0 0.0
    %345 = vmatmul.mubr.f32.gmra.mrb[0].mxu0 %v247
    %v346 = vpop.f32.mrb[0].mxu0
    %v347 = vadd.f32 %v229, %v346
    %v348 = vpop.f32.mrb[0].mxu0
    %349 = vmatprep.mubr.f32.mxu0 0.0
    %350 = vmatmul.mubr.f32.gmra.mrb[0].mxu0 %v250
    %v351 = vpop.f32.mrb[0].mxu0
    %v352 = vadd.f32 %v229, %v351
    %v353 = vpop.f32.mrb[0].mxu0
    %354 = vmatprep.mubr.f32.mxu0 0.0
    %355 = vmatmul.mubr.f32.gmra.mrb[0].mxu0 %v253
    %v356 = vpop.f32.mrb[0].mxu0
    %v357 = vadd.f32 %v229, %v356
    %v358 = vpop.f32.mrb[0].mxu0
    %359 = vdwg.mxu0
    %v360 = vtanh.pop %v322
    %v361 = vtanh.pop %v327
    %v362 = vtanh.pop %v332
    %v363 = vtanh.pop %v337
    %v364 = vtanh.pop %v342
    %v365 = vtanh.pop %v347
    %v366 = vtanh.pop %v352
    %v367 = vtanh.pop %v357
    %368 = vset.pattern.permute.xlu0 1
    %369 = vperm.xlu0 %368, %v37
    %v370 = vpop.permute.xlu0 %369
    %372 = vset.pattern.permute.xlu0 1
    %373 = vperm.xlu0 %372, %v38
    %v374 = vpop.permute.xlu0 %373
    %376 = vset.pattern.permute.xlu0 1
    %377 = vperm.xlu0 %376, %v39
    %v378 = vpop.permute.xlu0 %377
    %380 = vset.pattern.permute.xlu0 1
    %381 = vperm.xlu0 %380, %v40
    %v382 = vpop.permute.xlu0 %381
    %384 = vset.pattern.permute.xlu0 1
    %385 = vperm.xlu0 %384, %v41
    %v386 = vpop.permute.xlu0 %385
    %388 = vset.pattern.permute.xlu0 1
    %389 = vperm.xlu0 %388, %v42
    %v390 = vpop.permute.xlu0 %389
    %392 = vset.pattern.permute.xlu0 1
    %393 = vperm.xlu0 %392, %v43
    %v394 = vpop.permute.xlu0 %393
    %396 = vset.pattern.permute.xlu0 1
    %397 = vperm.xlu0 %396, %v44
    %v398 = vpop.permute.xlu0 %397
    %v400 = vmul.f32 %v360, %v370
    %v401 = vmul.f32 %v361, %v374
    %v402 = vmul.f32 %v362, %v378
    %v403 = vmul.f32 %v363, %v382
    %v404 = vmul.f32 %v364, %v386
    %v405 = vmul.f32 %v365, %v390
    %v406 = vmul.f32 %v366, %v394
    %v407 = vmul.f32 %v367, %v398
    %v408 = vlaneseq
    %v409 = vshrl.u32 %v408, 7
    %v410 = vadd.s32 %v409, 8
    %vm411 = vcmp.lt.s32.totalorder %v409, 8
    %vm412 = vcmp.lt.s32.totalorder %v410, 8
    %v413 = vsub.s32 %v409, 8
    %v414 = vsel %vm411, %v409, %v413
    %v415 = vsel %vm412, %v410, %v409
    %v416 = vmul.u32 %v414, 8
    %v417 = vmul.u32 %v415, 8
    %vm418 = vcmp.ge.s32.totalorder %v47, %v416
    %vm419 = vcmp.ge.s32.totalorder %v47, %v417
    %v420 = vadd.s32 %v416, 8
    %v421 = vadd.s32 %v417, 8
    %vm422 = vcmp.lt.s32.totalorder %v47, %v420
    %vm423 = vcmp.lt.s32.totalorder %v47, %v421
    %vm424 = vmand %vm418, %vm422
    %vm425 = vmand %vm419, %vm423
    %vm426 = vcmp.eq.s32.totalorder %v47, %v416
    %vm427 = vcmp.eq.s32.totalorder %v47, %v417
    %v428 = vsel %vm426, 1, 0
    %v429 = vsel %vm427, 1, 0
    %v430 = vcvt.s32.f32 %v428
    %v431 = vcvt.s32.f32 %v429
    %v432 = vsel %vm424, 1, 0
    %v433 = vsel %vm425, 1, 0
    %v434 = vcvt.s32.f32 %v432
    %v435 = vcvt.s32.f32 %v433
    %v436 = vmul.f32 %v434, 0.125
    %v437 = vmul.f32 %v435, 0.125
    %v438 = vsel %vm411, %v430, %v436
    %v439 = vsel %vm412, %v431, %v437
    %vm440 = vcmask 523264
    %v442 = vsel %vm440, %v438, 0
    %v445 = vsel %vm440, %v439, 0
    %447 = vmatprep.subr.mxu0 0.0
    %448 = vmatpush1.msra.mxu0 %v400
    %449 = vmatprep.subr.mxu0 0.0
    %450 = vmatpush1.msra.mxu0 %v401
    %451 = vmatprep.subr.mxu0 0.0
    %452 = vmatpush1.msra.mxu0 %v402
    %453 = vmatprep.subr.mxu0 0.0
    %454 = vmatpush1.msra.mxu0 %v403
    %455 = vmatprep.subr.mxu0 0.0
    %456 = vmatpush1.msra.mxu0 %v404
    %457 = vmatprep.subr.mxu0 0.0
    %458 = vmatpush1.msra.mxu0 %v405
    %459 = vmatprep.subr.mxu0 0.0
    %460 = vmatpush1.msra.mxu0 %v406
    %461 = vmatprep.subr.mxu0 0.0
    %462 = vmatpush1.msra.mxu0 %v407
    %463 = vmatprep.subr.mxu0 0.0
    %464 = vmatpush1.msra.mxu0 0.0
    %465 = vmatprep.subr.mxu0 0.0
    %466 = vmatpush1.msra.mxu0 0.0
    %467 = vmatprep.subr.mxu0 0.0
    %468 = vmatpush1.msra.mxu0 0.0
    %469 = vmatprep.subr.mxu0 0.0
    %470 = vmatpush1.msra.mxu0 0.0
    %471 = vmatprep.subr.mxu0 0.0
    %472 = vmatpush1.msra.mxu0 0.0
    %473 = vmatprep.subr.mxu0 0.0
    %474 = vmatpush1.msra.mxu0 0.0
    %475 = vmatprep.subr.mxu0 0.0
    %476 = vmatpush1.msra.mxu0 0.0
    %477 = vmatprep.subr.mxu0 0.0
    %478 = vmatpush1.msra.mxu0 0.0
    %479 = vmatprep.subr.mxu0 0.0
    %480 = vmatpush1.msra.mxu0 0.0
    %481 = vmatprep.subr.mxu0 0.0
    %482 = vmatpush1.msra.mxu0 0.0
    %483 = vmatprep.subr.mxu0 0.0
    %484 = vmatpush1.msra.mxu0 0.0
    %485 = vmatprep.subr.mxu0 0.0
    %486 = vmatpush1.msra.mxu0 0.0
    %487 = vmatprep.subr.mxu0 0.0
    %488 = vmatpush1.msra.mxu0 0.0
    %489 = vmatprep.subr.mxu0 0.0
    %490 = vmatpush1.msra.mxu0 0.0
    %491 = vmatprep.subr.mxu0 0.0
    %492 = vmatpush1.msra.mxu0 0.0
    %493 = vmatprep.subr.mxu0 0.0
    %494 = vmatpush1.msra.mxu0 0.0
    %495 = vmatprep.subr.mxu0 0.0
    %496 = vmatpush1.msra.mxu0 0.0
    %497 = vmatprep.subr.mxu0 0.0
    %498 = vmatpush1.msra.mxu0 0.0
    %499 = vmatprep.subr.mxu0 0.0
    %500 = vmatpush1.msra.mxu0 0.0
    %501 = vmatprep.subr.mxu0 0.0
    %502 = vmatpush1.msra.mxu0 0.0
    %503 = vmatprep.subr.mxu0 0.0
    %504 = vmatpush1.msra.mxu0 0.0
    %505 = vmatprep.subr.mxu0 0.0
    %506 = vmatpush1.msra.mxu0 0.0
    %507 = vmatprep.subr.mxu0 0.0
    %508 = vmatpush1.msra.mxu0 0.0
    %509 = vmatprep.subr.mxu0 0.0
    %510 = vmatpush1.msra.mxu0 0.0
    %511 = vmatprep.mubr.f32.mxu0 0.0
    %512 = vmatmul.mubr.f32.gmra.mrb[0].mxu0 %v442
    %v513 = vpop.f32.mrb[0].mxu0
    %v514 = vadd.f32 0.0, %v513
    %v515 = vpop.f32.mrb[0].mxu0
    %516 = vmatprep.mubr.f32.mxu0 0.0
    %517 = vmatmul.mubr.f32.gmra.mrb[0].mxu0 %v445
    %v518 = vpop.f32.mrb[0].mxu0
    %v519 = vadd.f32 0.0, %v518
    %v520 = vpop.f32.mrb[0].mxu0
    %521 = vdwg.mxu0
    %v522 = vlaneseq
    %v523 = vshrl.u32 %v522, 7
    %v524 = vsub.s32 0, %v523
    %v525 = vrot.slane %v26, %v524
    %v527 = vsel %vm230, %v514, 0
    %529 = vmatprep.subr.mxu0 0.0
    %530 = vmatpush1.msra.mxu0 %v22
    %531 = vmatprep.subr.mxu0 0.0
    %532 = vmatpush1.msra.mxu0 %v23
    %533 = vmatprep.subr.mxu0 0.0
    %534 = vmatpush1.msra.mxu0 %v24
    %535 = vmatprep.subr.mxu0 0.0
    %536 = vmatpush1.msra.mxu0 %v25
    %537 = vmatprep.subr.mxu0 0.0
    %538 = vmatpush1.msra.mxu0 0.0
    %539 = vmatprep.subr.mxu0 0.0
    %540 = vmatpush1.msra.mxu0 0.0
    %541 = vmatprep.subr.mxu0 0.0
    %542 = vmatpush1.msra.mxu0 0.0
    %543 = vmatprep.subr.mxu0 0.0
    %544 = vmatpush1.msra.mxu0 0.0
    %545 = vmatprep.subr.mxu0 0.0
    %546 = vmatpush1.msra.mxu0 0.0
    %547 = vmatprep.subr.mxu0 0.0
    %548 = vmatpush1.msra.mxu0 0.0
    %549 = vmatprep.subr.mxu0 0.0
    %550 = vmatpush1.msra.mxu0 0.0
    %551 = vmatprep.subr.mxu0 0.0
    %552 = vmatpush1.msra.mxu0 0.0
    %553 = vmatprep.subr.mxu0 0.0
    %554 = vmatpush1.msra.mxu0 0.0
    %555 = vmatprep.subr.mxu0 0.0
    %556 = vmatpush1.msra.mxu0 0.0
    %557 = vmatprep.subr.mxu0 0.0
    %558 = vmatpush1.msra.mxu0 0.0
    %559 = vmatprep.subr.mxu0 0.0
    %560 = vmatpush1.msra.mxu0 0.0
    %561 = vmatprep.subr.mxu0 0.0
    %562 = vmatpush1.msra.mxu0 0.0
    %563 = vmatprep.subr.mxu0 0.0
    %564 = vmatpush1.msra.mxu0 0.0
    %565 = vmatprep.subr.mxu0 0.0
    %566 = vmatpush1.msra.mxu0 0.0
    %567 = vmatprep.subr.mxu0 0.0
    %568 = vmatpush1.msra.mxu0 0.0
    %569 = vmatprep.subr.mxu0 0.0
    %570 = vmatpush1.msra.mxu0 0.0
    %571 = vmatprep.subr.mxu0 0.0
    %572 = vmatpush1.msra.mxu0 0.0
    %573 = vmatprep.subr.mxu0 0.0
    %574 = vmatpush1.msra.mxu0 0.0
    %575 = vmatprep.subr.mxu0 0.0
    %576 = vmatpush1.msra.mxu0 0.0
    %577 = vmatprep.subr.mxu0 0.0
    %578 = vmatpush1.msra.mxu0 0.0
    %579 = vmatprep.subr.mxu0 0.0
    %580 = vmatpush1.msra.mxu0 0.0
    %581 = vmatprep.subr.mxu0 0.0
    %582 = vmatpush1.msra.mxu0 0.0
    %583 = vmatprep.subr.mxu0 0.0
    %584 = vmatpush1.msra.mxu0 0.0
    %585 = vmatprep.subr.mxu0 0.0
    %586 = vmatpush1.msra.mxu0 0.0
    %587 = vmatprep.subr.mxu0 0.0
    %588 = vmatpush1.msra.mxu0 0.0
    %589 = vmatprep.subr.mxu0 0.0
    %590 = vmatpush1.msra.mxu0 0.0
    %591 = vmatprep.subr.mxu0 0.0
    %592 = vmatpush1.msra.mxu0 0.0
    %593 = vmatprep.mubr.f32.mxu0 0.0
    %594 = vmatmul.mubr.f32.gmra.mrb[0].mxu0 %v527
    %v595 = vpop.f32.mrb[0].mxu0
    %v596 = vadd.f32 %v525, %v595
    %v597 = vpop.f32.mrb[0].mxu0
    %598 = vdwg.mxu0
    %599 = vst.msk [vmem:[#allocation4] sm:$0xff] %vm230, %v596
    %600 = vset.pattern.permute.xlu0 0
    %601 = vperm.xlu0 %600, %v45
    %v602 = vpop.permute.xlu0 %601
    %vm603 = vcmp.eq.s32.totalorder %v47, %v602
    %v604 = vsel %vm603, 1, 0
    %v605 = vcvt.s32.f32 %v604
    %v606 = vsel %vm230, %v596, -inf
    %607 = vmax.xlane.f32.xlu0 %v606
    %v608 = vpop.xlane.xlu0 %607
    %v609 = vsub.f32 %v596, %v608
    %v610 = vmul.f32 %v609, 1.442695
    %v611 = vpow.pop %v610
    %v612 = vsel %vm230, %v611, 0.0
    %613 = vadd.xlane.f32.xlu0 %v612
    %v614 = vpop.xlane.xlu0 %613
    %v615 = vlog2.pop %v614
    %v616 = vmul.f32 %v615, 0.6931472
    %v617 = vadd.f32 %v608, %v616
    %v618 = vmul.f32 %v596, %v605
    %v619 = vsel %vm230, %v618, 0.0
    %620 = vadd.xlane.f32.xlu0 %v619
    %v621 = vpop.xlane.xlu0 %620
    %v622 = vsub.f32 %v617, %v621
    %vm623 = vcmp.lt.s32.totalorder %v409, 2
    %v624 = vsel %vm623, %v622, 0.0
    %vm625 = vcmask 7168
    %v626 = vsel %vm625, %v624, 0.0
    %627 = vadd.xlane.f32.xlu0 %v626
    %v628 = vpop.xlane.xlu0 %627
    %v629 = vrot.slane %v628, 4
    %v630 = vadd.f32 %v628, %v629
    %v631 = vrot.slane %v630, 2
    %v632 = vadd.f32 %v630, %v631
    %v633 = vrot.slane %v632, 1
    %v634 = vadd.f32 %v632, %v633
    %s635 = vtos %v634
    %v636 = vrcp.pop 2.0
    %s637 = vtos %v636
    %s638 = smul.f32 %s635, %s637
    %vm639 = vcmp.ge.s32.totalorder %v409, 2
    %vm640 = vcmp.lt.s32.totalorder %v409, 4
    %vm641 = vmand %vm639, %vm640
    %v642 = vsel %vm641, %v622, 0.0
    %v643 = vsel %vm625, %v642, 0.0
    %644 = vadd.xlane.f32.xlu0 %v643
    %v645 = vpop.xlane.xlu0 %644
    %v646 = vrot.slane %v645, 4
    %v647 = vadd.f32 %v645, %v646
    %v648 = vrot.slane %v647, 2
    %v649 = vadd.f32 %v647, %v648
    %v650 = vrot.slane %v649, 1
    %v651 = vadd.f32 %v649, %v650
    %s652 = vtos %v651
    %v653 = vrcp.pop 2.0
    %s654 = vtos %v653
    %s655 = smul.f32 %s652, %s654
    %v656 = vlaneseq
    %v657 = vshrl.u32 %v656, 7
    %v658 = vsub.s32 0, %v657
    %v659 = vrot.slane %v31, %v658
    %v661 = vsel %vm230, %v519, 0
    %663 = vmatprep.subr.mxu0 0.0
    %664 = vmatpush1.msra.mxu0 %v27
    %665 = vmatprep.subr.mxu0 0.0
    %666 = vmatpush1.msra.mxu0 %v28
    %667 = vmatprep.subr.mxu0 0.0
    %668 = vmatpush1.msra.mxu0 %v29
    %669 = vmatprep.subr.mxu0 0.0
    %670 = vmatpush1.msra.mxu0 %v30
    %671 = vmatprep.subr.mxu0 0.0
    %672 = vmatpush1.msra.mxu0 0.0
    %673 = vmatprep.subr.mxu0 0.0
    %674 = vmatpush1.msra.mxu0 0.0
    %675 = vmatprep.subr.mxu0 0.0
    %676 = vmatpush1.msra.mxu0 0.0
    %677 = vmatprep.subr.mxu0 0.0
    %678 = vmatpush1.msra.mxu0 0.0
    %679 = vmatprep.subr.mxu0 0.0
    %680 = vmatpush1.msra.mxu0 0.0
    %681 = vmatprep.subr.mxu0 0.0
    %682 = vmatpush1.msra.mxu0 0.0
    %683 = vmatprep.subr.mxu0 0.0
    %684 = vmatpush1.msra.mxu0 0.0
    %685 = vmatprep.subr.mxu0 0.0
    %686 = vmatpush1.msra.mxu0 0.0
    %687 = vmatprep.subr.mxu0 0.0
    %688 = vmatpush1.msra.mxu0 0.0
    %689 = vmatprep.subr.mxu0 0.0
    %690 = vmatpush1.msra.mxu0 0.0
    %691 = vmatprep.subr.mxu0 0.0
    %692 = vmatpush1.msra.mxu0 0.0
    %693 = vmatprep.subr.mxu0 0.0
    %694 = vmatpush1.msra.mxu0 0.0
    %695 = vmatprep.subr.mxu0 0.0
    %696 = vmatpush1.msra.mxu0 0.0
    %697 = vmatprep.subr.mxu0 0.0
    %698 = vmatpush1.msra.mxu0 0.0
    %699 = vmatprep.subr.mxu0 0.0
    %700 = vmatpush1.msra.mxu0 0.0
    %701 = vmatprep.subr.mxu0 0.0
    %702 = vmatpush1.msra.mxu0 0.0
    %703 = vmatprep.subr.mxu0 0.0
    %704 = vmatpush1.msra.mxu0 0.0
    %705 = vmatprep.subr.mxu0 0.0
    %706 = vmatpush1.msra.mxu0 0.0
    %707 = vmatprep.subr.mxu0 0.0
    %708 = vmatpush1.msra.mxu0 0.0
    %709 = vmatprep.subr.mxu0 0.0
    %710 = vmatpush1.msra.mxu0 0.0
    %711 = vmatprep.subr.mxu0 0.0
    %712 = vmatpush1.msra.mxu0 0.0
    %713 = vmatprep.subr.mxu0 0.0
    %714 = vmatpush1.msra.mxu0 0.0
    %715 = vmatprep.subr.mxu0 0.0
    %716 = vmatpush1.msra.mxu0 0.0
    %717 = vmatprep.subr.mxu0 0.0
    %718 = vmatpush1.msra.mxu0 0.0
    %719 = vmatprep.subr.mxu0 0.0
    %720 = vmatpush1.msra.mxu0 0.0
    %721 = vmatprep.subr.mxu0 0.0
    %722 = vmatpush1.msra.mxu0 0.0
    %723 = vmatprep.subr.mxu0 0.0
    %724 = vmatpush1.msra.mxu0 0.0
    %725 = vmatprep.subr.mxu0 0.0
    %726 = vmatpush1.msra.mxu0 0.0
    %727 = vmatprep.mubr.f32.mxu0 0.0
    %728 = vmatmul.mubr.f32.gmra.mrb[0].mxu0 %v661
    %v729 = vpop.f32.mrb[0].mxu0
    %v730 = vadd.f32 %v659, %v729
    %v731 = vpop.f32.mrb[0].mxu0
    %732 = vdwg.mxu0
    %v733 = vmax.f32 %v730, 0.0
    %v734 = vlaneseq
    %v735 = vshrl.u32 %v734, 7
    %v736 = vsub.s32 0, %v735
    %v737 = vrot.slane %v36, %v736
    %v739 = vsel %vm230, %v733, 0
    %741 = vmatprep.subr.mxu0 0.0
    %742 = vmatpush1.msra.mxu0 %v32
    %743 = vmatprep.subr.mxu0 0.0
    %744 = vmatpush1.msra.mxu0 %v33
    %745 = vmatprep.subr.mxu0 0.0
    %746 = vmatpush1.msra.mxu0 %v34
    %747 = vmatprep.subr.mxu0 0.0
    %748 = vmatpush1.msra.mxu0 %v35
    %749 = vmatprep.subr.mxu0 0.0
    %750 = vmatpush1.msra.mxu0 0.0
    %751 = vmatprep.subr.mxu0 0.0
    %752 = vmatpush1.msra.mxu0 0.0
    %753 = vmatprep.subr.mxu0 0.0
    %754 = vmatpush1.msra.mxu0 0.0
    %755 = vmatprep.subr.mxu0 0.0
    %756 = vmatpush1.msra.mxu0 0.0
    %757 = vmatprep.subr.mxu0 0.0
    %758 = vmatpush1.msra.mxu0 0.0
    %759 = vmatprep.subr.mxu0 0.0
    %760 = vmatpush1.msra.mxu0 0.0
    %761 = vmatprep.subr.mxu0 0.0
    %762 = vmatpush1.msra.mxu0 0.0
    %763 = vmatprep.subr.mxu0 0.0
    %764 = vmatpush1.msra.mxu0 0.0
    %765 = vmatprep.subr.mxu0 0.0
    %766 = vmatpush1.msra.mxu0 0.0
    %767 = vmatprep.subr.mxu0 0.0
    %768 = vmatpush1.msra.mxu0 0.0
    %769 = vmatprep.subr.mxu0 0.0
    %770 = vmatpush1.msra.mxu0 0.0
    %771 = vmatprep.subr.mxu0 0.0
    %772 = vmatpush1.msra.mxu0 0.0
    %773 = vmatprep.subr.mxu0 0.0
    %774 = vmatpush1.msra.mxu0 0.0
    %775 = vmatprep.subr.mxu0 0.0
    %776 = vmatpush1.msra.mxu0 0.0
    %777 = vmatprep.subr.mxu0 0.0
    %778 = vmatpush1.msra.mxu0 0.0
    %779 = vmatprep.subr.mxu0 0.0
    %780 = vmatpush1.msra.mxu0 0.0
    %781 = vmatprep.subr.mxu0 0.0
    %782 = vmatpush1.msra.mxu0 0.0
    %783 = vmatprep.subr.mxu0 0.0
    %784 = vmatpush1.msra.mxu0 0.0
    %785 = vmatprep.subr.mxu0 0.0
    %786 = vmatpush1.msra.mxu0 0.0
    %787 = vmatprep.subr.mxu0 0.0
    %788 = vmatpush1.msra.mxu0 0.0
    %789 = vmatprep.subr.mxu0 0.0
    %790 = vmatpush1.msra.mxu0 0.0
    %791 = vmatprep.subr.mxu0 0.0
    %792 = vmatpush1.msra.mxu0 0.0
    %793 = vmatprep.subr.mxu0 0.0
    %794 = vmatpush1.msra.mxu0 0.0
    %795 = vmatprep.subr.mxu0 0.0
    %796 = vmatpush1.msra.mxu0 0.0
    %797 = vmatprep.subr.mxu0 0.0
    %798 = vmatpush1.msra.mxu0 0.0
    %799 = vmatprep.subr.mxu0 0.0
    %800 = vmatpush1.msra.mxu0 0.0
    %801 = vmatprep.subr.mxu0 0.0
    %802 = vmatpush1.msra.mxu0 0.0
    %803 = vmatprep.subr.mxu0 0.0
    %804 = vmatpush1.msra.mxu0 0.0
    %805 = vmatprep.mubr.f32.mxu0 0.0
    %806 = vmatmul.mubr.f32.gmra.mrb[0].mxu0 %v739
    %v807 = vpop.f32.mrb[0].mxu0
    %v808 = vadd.f32 %v737, %v807
    %v809 = vpop.f32.mrb[0].mxu0
    %810 = vdwg.mxu0
    %v811 = vmul.f32 %v808, %v808
    %v812 = vsel %vm230, %v811, 0.0
    %813 = vadd.xlane.f32.xlu0 %v812
    %v814 = vpop.xlane.xlu0 %813
    %v816 = vsel %vm230, 1.0, 0
    %v819 = vsel %vm230, %v811, 0
    %821 = vmatprep.subr.mxu0 0.0
    %822 = vmatpush1.xpose.msra.mxu0 %v819
    %823 = vmatprep.subr.mxu0 0.0
    %824 = vmatpush1.xpose.msra.mxu0 0.0
    %825 = vmatprep.subr.mxu0 0.0
    %826 = vmatpush1.xpose.msra.mxu0 0.0
    %827 = vmatprep.subr.mxu0 0.0
    %828 = vmatpush1.xpose.msra.mxu0 0.0
    %829 = vmatprep.subr.mxu0 0.0
    %830 = vmatpush1.xpose.msra.mxu0 0.0
    %831 = vmatprep.subr.mxu0 0.0
    %832 = vmatpush1.xpose.msra.mxu0 0.0
    %833 = vmatprep.subr.mxu0 0.0
    %834 = vmatpush1.xpose.msra.mxu0 0.0
    %835 = vmatprep.subr.mxu0 0.0
    %836 = vmatpush1.xpose.msra.mxu0 0.0
    %837 = vmatprep.subr.mxu0 0.0
    %838 = vmatpush1.xpose.msra.mxu0 0.0
    %839 = vmatprep.subr.mxu0 0.0
    %840 = vmatpush1.xpose.msra.mxu0 0.0
    %841 = vmatprep.subr.mxu0 0.0
    %842 = vmatpush1.xpose.msra.mxu0 0.0
    %843 = vmatprep.subr.mxu0 0.0
    %844 = vmatpush1.xpose.msra.mxu0 0.0
    %845 = vmatprep.subr.mxu0 0.0
    %846 = vmatpush1.xpose.msra.mxu0 0.0
    %847 = vmatprep.subr.mxu0 0.0
    %848 = vmatpush1.xpose.msra.mxu0 0.0
    %849 = vmatprep.subr.mxu0 0.0
    %850 = vmatpush1.xpose.msra.mxu0 0.0
    %851 = vmatprep.subr.mxu0 0.0
    %852 = vmatpush1.xpose.msra.mxu0 0.0
    %853 = vmatprep.subr.mxu0 0.0
    %854 = vmatpush1.xpose.msra.mxu0 0.0
    %855 = vmatprep.subr.mxu0 0.0
    %856 = vmatpush1.xpose.msra.mxu0 0.0
    %857 = vmatprep.subr.mxu0 0.0
    %858 = vmatpush1.xpose.msra.mxu0 0.0
    %859 = vmatprep.subr.mxu0 0.0
    %860 = vmatpush1.xpose.msra.mxu0 0.0
    %861 = vmatprep.subr.mxu0 0.0
    %862 = vmatpush1.xpose.msra.mxu0 0.0
    %863 = vmatprep.subr.mxu0 0.0
    %864 = vmatpush1.xpose.msra.mxu0 0.0
    %865 = vmatprep.subr.mxu0 0.0
    %866 = vmatpush1.xpose.msra.mxu0 0.0
    %867 = vmatprep.subr.mxu0 0.0
    %868 = vmatpush1.xpose.msra.mxu0 0.0
    %869 = vmatprep.subr.mxu0 0.0
    %870 = vmatpush1.xpose.msra.mxu0 0.0
    %871 = vmatprep.subr.mxu0 0.0
    %872 = vmatpush1.xpose.msra.mxu0 0.0
    %873 = vmatprep.subr.mxu0 0.0
    %874 = vmatpush1.xpose.msra.mxu0 0.0
    %875 = vmatprep.subr.mxu0 0.0
    %876 = vmatpush1.xpose.msra.mxu0 0.0
    %877 = vmatprep.subr.mxu0 0.0
    %878 = vmatpush1.xpose.msra.mxu0 0.0
    %879 = vmatprep.subr.mxu0 0.0
    %880 = vmatpush1.xpose.msra.mxu0 0.0
    %881 = vmatprep.subr.mxu0 0.0
    %882 = vmatpush1.xpose.msra.mxu0 0.0
    %883 = vmatprep.subr.mxu0 0.0
    %884 = vmatpush1.xpose.msra.mxu0 0.0
    %885 = vmatprep.mubr.f32.mxu0 0.0
    %886 = vmatmul.mubr.f32.gmra.mrb[0].mxu0 %v816
    %v887 = vpop.f32.mrb[0].mxu0
    %v888 = vadd.f32 0.0, %v887
    %v889 = vpop.f32.mrb[0].mxu0
    %890 = vdwg.mxu0
    %v892 = vsel %vm230, %v808, 0
    %894 = vmatprep.subr.mxu0 0.0
    %895 = vmatpush1.xpose.msra.mxu0 %v892
    %896 = vmatprep.subr.mxu0 0.0
    %897 = vmatpush1.xpose.msra.mxu0 0.0
    %898 = vmatprep.subr.mxu0 0.0
    %899 = vmatpush1.xpose.msra.mxu0 0.0
    %900 = vmatprep.subr.mxu0 0.0
    %901 = vmatpush1.xpose.msra.mxu0 0.0
    %902 = vmatprep.subr.mxu0 0.0
    %903 = vmatpush1.xpose.msra.mxu0 0.0
    %904 = vmatprep.subr.mxu0 0.0
    %905 = vmatpush1.xpose.msra.mxu0 0.0
    %906 = vmatprep.subr.mxu0 0.0
    %907 = vmatpush1.xpose.msra.mxu0 0.0
    %908 = vmatprep.subr.mxu0 0.0
    %909 = vmatpush1.xpose.msra.mxu0 0.0
    %910 = vmatprep.subr.mxu0 0.0
    %911 = vmatpush1.xpose.msra.mxu0 0.0
    %912 = vmatprep.subr.mxu0 0.0
    %913 = vmatpush1.xpose.msra.mxu0 0.0
    %914 = vmatprep.subr.mxu0 0.0
    %915 = vmatpush1.xpose.msra.mxu0 0.0
    %916 = vmatprep.subr.mxu0 0.0
    %917 = vmatpush1.xpose.msra.mxu0 0.0
    %918 = vmatprep.subr.mxu0 0.0
    %919 = vmatpush1.xpose.msra.mxu0 0.0
    %920 = vmatprep.subr.mxu0 0.0
    %921 = vmatpush1.xpose.msra.mxu0 0.0
    %922 = vmatprep.subr.mxu0 0.0
    %923 = vmatpush1.xpose.msra.mxu0 0.0
    %924 = vmatprep.subr.mxu0 0.0
    %925 = vmatpush1.xpose.msra.mxu0 0.0
    %926 = vmatprep.subr.mxu0 0.0
    %927 = vmatpush1.xpose.msra.mxu0 0.0
    %928 = vmatprep.subr.mxu0 0.0
    %929 = vmatpush1.xpose.msra.mxu0 0.0
    %930 = vmatprep.subr.mxu0 0.0
    %931 = vmatpush1.xpose.msra.mxu0 0.0
    %932 = vmatprep.subr.mxu0 0.0
    %933 = vmatpush1.xpose.msra.mxu0 0.0
    %934 = vmatprep.subr.mxu0 0.0
    %935 = vmatpush1.xpose.msra.mxu0 0.0
    %936 = vmatprep.subr.mxu0 0.0
    %937 = vmatpush1.xpose.msra.mxu0 0.0
    %938 = vmatprep.subr.mxu0 0.0
    %939 = vmatpush1.xpose.msra.mxu0 0.0
    %940 = vmatprep.subr.mxu0 0.0
    %941 = vmatpush1.xpose.msra.mxu0 0.0
    %942 = vmatprep.subr.mxu0 0.0
    %943 = vmatpush1.xpose.msra.mxu0 0.0
    %944 = vmatprep.subr.mxu0 0.0
    %945 = vmatpush1.xpose.msra.mxu0 0.0
    %946 = vmatprep.subr.mxu0 0.0
    %947 = vmatpush1.xpose.msra.mxu0 0.0
    %948 = vmatprep.subr.mxu0 0.0
    %949 = vmatpush1.xpose.msra.mxu0 0.0
    %950 = vmatprep.subr.mxu0 0.0
    %951 = vmatpush1.xpose.msra.mxu0 0.0
    %952 = vmatprep.subr.mxu0 0.0
    %953 = vmatpush1.xpose.msra.mxu0 0.0
    %954 = vmatprep.subr.mxu0 0.0
    %955 = vmatpush1.xpose.msra.mxu0 0.0
    %956 = vmatprep.subr.mxu0 0.0
    %957 = vmatpush1.xpose.msra.mxu0 0.0
    %958 = vmatprep.mubr.f32.mxu0 0.0
    %959 = vmatmul.mubr.f32.gmra.mrb[0].mxu0 %v892
    %v960 = vpop.f32.mrb[0].mxu0
    %v961 = vadd.f32 0.0, %v960
    %v962 = vpop.f32.mrb[0].mxu0
    %963 = vdwg.mxu0
    %v964 = vmax.f32 %v814, 1e-24
    %v965 = vrsqrt.pop %v964
    %v966 = vmax.f32 %v888, 1e-24
    %v967 = vrsqrt.pop %v966
    %v968 = vmul.f32 %v961, %v965
    %v969 = vlaneseq
    %v970 = vshrl.u32 %v969, 7
    %v971 = vsub.s32 0, %v970
    %v972 = vrot.slane %v967, %v971
    %v973 = vmul.f32 %v968, %v972
    %vm974 = vcmp.lt.s32.totalorder %v47, 4
    %vm975 = vmxor %vm640, %vm974
    %vm976 = vmxor %vm975, 1
    %v977 = vadd.s32 %v409, 2
    %vm978 = vcmp.eq.s32.totalorder %v47, %v977
    %v979 = vsub.s32 %v409, 2
    %vm980 = vcmp.eq.s32.totalorder %v47, %v979
    %vm981 = vmor %vm978, %vm980
    %vm982 = vmand %vm976, %vm981
    %v983 = vsel %vm982, 1, 0
    %v984 = vcvt.s32.f32 %v983
    %vm985 = vcmp.ne.s32.totalorder %v409, %v47
    %vm986 = vmand %vm976, %vm985
    %v987 = vsel %vm986, 1, 0
    %v988 = vcvt.s32.f32 %v987
    %v989 = vmul.f32 %v973, %v984
    %vm990 = vcmask 64512
    %v991 = vsel %vm990, %v989, 0.0
    %992 = vadd.xlane.f32.xlu0 %v991
    %v993 = vpop.xlane.xlu0 %992
    %v994 = vrcp.pop 0.5
    %v995 = vmul.f32 %v973, %v994
    %v996 = vmul.f32 %v995, 1.442695
    %v997 = vpow.pop %v996
    %v998 = vmul.f32 %v988, %v997
    %v999 = vsel %vm990, %v998, 0.0
    %1000 = vadd.xlane.f32.xlu0 %v999
    %v1001 = vpop.xlane.xlu0 %1000
    %v1002 = vsub.f32 0.0, %v993
    %v1003 = vmul.f32 %v1002, %v994
    %v1004 = vlog2.pop %v1001
    %v1005 = vmul.f32 %v1004, 0.6931472
    %v1006 = vadd.f32 %v1003, %v1005
    %v1007 = vsel %vm640, %v1006, 0.0
    %v1008 = vsel %vm625, %v1007, 0.0
    %1009 = vadd.xlane.f32.xlu0 %v1008
    %v1010 = vpop.xlane.xlu0 %1009
    %v1011 = vrot.slane %v1010, 4
    %v1012 = vadd.f32 %v1010, %v1011
    %v1013 = vrot.slane %v1012, 2
    %v1014 = vadd.f32 %v1012, %v1013
    %v1015 = vrot.slane %v1014, 1
    %v1016 = vadd.f32 %v1014, %v1015
    %s1017 = vtos %v1016
    %v1018 = vrcp.pop 4.0
    %s1019 = vtos %v1018
    %s1020 = smul.f32 %s1017, %s1019
    %vm1021 = vcmp.ge.s32.totalorder %v409, 4
    %v1022 = vsel %vm1021, %v1006, 0.0
    %v1023 = vsel %vm625, %v1022, 0.0
    %1024 = vadd.xlane.f32.xlu0 %v1023
    %v1025 = vpop.xlane.xlu0 %1024
    %v1026 = vrot.slane %v1025, 4
    %v1027 = vadd.f32 %v1025, %v1026
    %v1028 = vrot.slane %v1027, 2
    %v1029 = vadd.f32 %v1027, %v1028
    %v1030 = vrot.slane %v1029, 1
    %v1031 = vadd.f32 %v1029, %v1030
    %s1032 = vtos %v1031
    %v1033 = vrcp.pop 4.0
    %s1034 = vtos %v1033
    %s1035 = smul.f32 %s1032, %s1034
    %v1036 = vlaneseq
    %v1037 = vshrl.u32 %v1036, 7
    %v1038 = vsub.s32 0, %v1037
    %v1039 = vrot.slane %v888, %v1038
    %v1040 = vadd.f32 %v814, %v1039
    %v1041 = vmul.f32 %v961, 2.0
    %v1042 = vsub.f32 %v1040, %v1041
    %v1043 = vmax.f32 %v1042, 0.0
    %v1044 = vmul.f32 %v1043, -0.5
    %v1045 = vrcp.pop 10.0
    %v1046 = vmul.f32 %v1044, %v1045
    %v1047 = vmul.f32 %v1046, 1.442695
    %v1048 = vpow.pop %v1047
    %v1049 = vadd.f32 %v1048, 0.0
    %v1050 = vrcp.pop 15.0
    %v1051 = vmul.f32 %v1044, %v1050
    %v1052 = vmul.f32 %v1051, 1.442695
    %v1053 = vpow.pop %v1052
    %v1054 = vadd.f32 %v1049, %v1053
    %v1055 = vrcp.pop 20.0
    %v1056 = vmul.f32 %v1044, %v1055
    %v1057 = vmul.f32 %v1056, 1.442695
    %v1058 = vpow.pop %v1057
    %v1059 = vadd.f32 %v1054, %v1058
    %v1060 = vrcp.pop 50.0
    %v1061 = vmul.f32 %v1044, %v1060
    %v1062 = vmul.f32 %v1061, 1.442695
    %v1063 = vpow.pop %v1062
    %v1064 = vadd.f32 %v1059, %v1063
    %vm1065 = vcmp.lt.s32.totalorder %v47, 2
    %vm1066 = vmand %vm623, %vm1065
    %v1067 = vsel %vm1066, 1, 0
    %v1068 = vcvt.s32.f32 %v1067
    %vm1069 = vcmp.lt.s32.totalorder %v409, 6
    %vm1070 = vmand %vm1021, %vm1069
    %vm1071 = vcmp.ge.s32.totalorder %v47, 4
    %vm1072 = vcmp.lt.s32.totalorder %v47, 6
    %vm1073 = vmand %vm1071, %vm1072
    %vm1074 = vmand %vm1070, %vm1073
    %v1075 = vsel %vm1074, 1, 0
    %v1076 = vcvt.s32.f32 %v1075
    %vm1077 = vmand %vm623, %vm1073
    %v1078 = vsel %vm1077, 1, 0
    %v1079 = vcvt.s32.f32 %v1078
    %v1080 = vmul.f32 %v1064, %v1068
    %v1081 = vsel %vm990, %v1080, 0.0
    %1082 = vadd.xlane.f32.xlu0 %v1081
    %v1083 = vpop.xlane.xlu0 %1082
    %v1084 = vrot.slane %v1083, 4
    %v1085 = vadd.f32 %v1083, %v1084
    %v1086 = vrot.slane %v1085, 2
    %v1087 = vadd.f32 %v1085, %v1086
    %v1088 = vrot.slane %v1087, 1
    %v1089 = vadd.f32 %v1087, %v1088
    %s1090 = vtos %v1089
    %v1091 = vmul.f32 %v1064, %v1076
    %v1092 = vsel %vm990, %v1091, 0.0
    %1093 = vadd.xlane.f32.xlu0 %v1092
    %v1094 = vpop.xlane.xlu0 %1093
    %v1095 = vrot.slane %v1094, 4
    %v1096 = vadd.f32 %v1094, %v1095
    %v1097 = vrot.slane %v1096, 2
    %v1098 = vadd.f32 %v1096, %v1097
    %v1099 = vrot.slane %v1098, 1
    %v1100 = vadd.f32 %v1098, %v1099
    %s1101 = vtos %v1100
    %s1102 = sadd.f32 %s1090, %s1101
    %v1103 = vmul.f32 %v1064, %v1079
    %v1104 = vsel %vm990, %v1103, 0.0
    %1105 = vadd.xlane.f32.xlu0 %v1104
    %v1106 = vpop.xlane.xlu0 %1105
    %v1107 = vrot.slane %v1106, 4
    %v1108 = vadd.f32 %v1106, %v1107
    %v1109 = vrot.slane %v1108, 2
    %v1110 = vadd.f32 %v1108, %v1109
    %v1111 = vrot.slane %v1110, 1
    %v1112 = vadd.f32 %v1110, %v1111
    %s1113 = vtos %v1112
    %s1114 = smul.f32 %s1113, 2.0
    %s1115 = ssub.f32 %s1102, %s1114
    %v1116 = vrcp.pop 4.0
    %s1117 = vtos %v1116
    %s1118 = smul.f32 %s1115, %s1117
    %s1119 = sadd.f32 %s638, %s655
    %s1120 = smul.f32 %s1119, 0.5
    %v1121 = vrcp.pop 2.0
    %s1122 = vtos %v1121
    %s1123 = smul.f32 %s1120, %s1122
    %s1124 = sadd.f32 %s1020, %s1035
    %s1125 = smul.f32 %s1124, 0.5
    %v1126 = vrcp.pop 2.0
    %s1127 = vtos %v1126
    %s1128 = smul.f32 %s1125, %s1127
    %s1129 = sadd.f32 %s1123, %s1128
    %s1130 = sadd.f32 %s1129, %s1118
    %vm1131 = vcmp.eq.s32.totalorder %v47, 0
    %vm1132 = vcmp.eq.s32.totalorder %v47, 1
    %vm1133 = vcmp.eq.s32.totalorder %v47, 2
    %vm1134 = vcmp.eq.s32.totalorder %v47, 3
    %vm1135 = vcmp.eq.s32.totalorder %v47, 4
    %vm1136 = vcmp.eq.s32.totalorder %v47, 5
    %v1137 = vstv %s1118
    %v1138 = vsel %vm1136, %v1137, 0.0
    %v1139 = vstv %s655
    %v1140 = vsel %vm1135, %v1139, %v1138
    %v1141 = vstv %s638
    %v1142 = vsel %vm1134, %v1141, %v1140
    %v1143 = vstv %s1035
    %v1144 = vsel %vm1133, %v1143, %v1142
    %v1145 = vstv %s1020
    %v1146 = vsel %vm1132, %v1145, %v1144
    %v1147 = vstv %s1130
    %v1148 = vsel %vm1131, %v1147, %v1146
    %vm1149 = vcmask 57344
    %1150 = vst.msk [vmem:[#allocation2] sm:$0x1] %vm1149, %v1148
    // Predicated region
    $region10: #{tpu_custom_call.1} parent=1 // pred_check
      _
    $region11: #{tpu_custom_call.1} parent=1 // pred_check_branch
      %1152 = sbr.rel (0) target = $region13
    $region12: #{tpu_custom_call.1} parent=1 // pred_region
      %s1154 = ssub.s32 16, 16
      %1155 = vsyncadd [#allocation3], %s1154
      %s1157 = sshll.u32 [#allocation2], 4
      %s1158 = int_to_ptr.vmem [resolvable:$true] %s1157
      %1160 = dma.vmem_to_hbm [thread:$0]  %s1158, 16, %s2, [#allocation3]
    $region13: #{tpu_custom_call.1} parent=1 // pred_fallthru
      _
    // Predicated region
    $region14: #{tpu_custom_call.1} parent=1 // pred_check
      _
    $region15: #{tpu_custom_call.1} parent=1 // pred_check_branch
      %1162 = sbr.rel (0) target = $region17
    $region16: #{tpu_custom_call.1} parent=1 // pred_region
      %s1164 = ssub.s32 128, 128
      %1165 = vsyncadd [#allocation5], %s1164
      %s1167 = sshll.u32 [#allocation4], 4
      %s1168 = int_to_ptr.vmem [resolvable:$true] %s1167
      %1170 = dma.vmem_to_hbm [thread:$0]  %s1168, 128, %s3, [#allocation5]
    $region17: #{tpu_custom_call.1} parent=1 // pred_fallthru
      _
    // Predicated region
    $region18: #{tpu_custom_call.1} parent=1 // pred_check
      _
    $region19: #{tpu_custom_call.1} parent=1 // pred_check_branch
      %1172 = sbr.rel (0) target = $region21
    $region20: #{tpu_custom_call.1} parent=1 // pred_region
      %1173 = dma.done [#allocation3], 16
    $region21: #{tpu_custom_call.1} parent=1 // pred_fallthru
      _
    // Predicated region
    $region22: #{tpu_custom_call.1} parent=1 // pred_check
      _
    $region23: #{tpu_custom_call.1} parent=1 // pred_check_branch
      %1175 = sbr.rel (0) target = $region25
    $region24: #{tpu_custom_call.1} parent=1 // pred_region
      %1176 = dma.done [#allocation5], 128
    $region25: #{tpu_custom_call.1} parent=1 // pred_fallthru
      _
    %1177 = vsyncpa [#allocation3], 1
    %1178 = vsyncpa [#allocation5], 1

</llo_original>
